<compile_context>
chip_gen: v6e
topology: v6e:2x2x1
jax: 0.10.0
libtpu: 0.0.40
codegen_flags: <defaults>
</compile_context>

<pallas_src>
import jax
import jax.numpy as jnp
from jax import lax
from jax.experimental import pallas as pl
from jax.experimental.pallas import tpu as pltpu


def _round_up(n, m):
    return (n + m - 1) // m * m


def _build_stacked_weights(w_oihw, bias, pool_scale):
    """Stack the 9 conv taps into 4 shift-group matrices.

    Returns:
      wstack: (4, 4*Cout, 4*Cin) bf16. Group g = ah*2+ch; row block
              ph*Cout:+Cout is pool phase ph=(py*2+px); column block
              (ar*2+cr)*Cin:+Cin multiplies input sub-lattice (ar, cr).
      b4:     (4*Cout, 1) f32 bias tiled over the 4 phase row blocks.
    Both pre-scaled by the pool factor (0.25) -- exact, relu commutes with a
    positive power-of-two scale.
    """
    Cout, Cin, KH, KW = w_oihw.shape
    w = w_oihw.astype(jnp.float32) * pool_scale
    zero = jnp.zeros((Cout, Cin), jnp.float32)
    groups = []
    for ah in (0, 1):
        for ch in (0, 1):
            phase_rows = []
            for py in (0, 1):
                for px in (0, 1):
                    blocks = [zero] * 4
                    for dy in range(KH):
                        for dx in range(KW):
                            a, c = py + dy, px + dx
                            if (a // 2, c // 2) == (ah, ch):
                                k = (a % 2) * 2 + (c % 2)
                                blocks[k] = blocks[k] + w[:, :, dy, dx]
                    phase_rows.append(jnp.concatenate(blocks, axis=1))  # (Cout, 4*Cin)
            groups.append(jnp.concatenate(phase_rows, axis=0))          # (4*Cout, 4*Cin)
    wstack = jnp.stack(groups).astype(jnp.bfloat16)                     # (4, 4*Cout, 4*Cin)
    b4 = jnp.tile(bias.astype(jnp.float32) * pool_scale, 4).reshape(4 * Cout, 1)
    return wstack, b4


def conv_relu_avgpool(x_nchw, w_oihw, bias):
    """conv3x3(pad=1) -> relu -> 2x2/2 avg-pool, returned as NCHW."""
    N, Cin, H, W = x_nchw.shape
    Cout, Cin2, KH, KW = w_oihw.shape
    assert N == 1 and Cin == Cin2 and (KH, KW) == (3, 3)
    assert H % 2 == 0 and W % 2 == 0
    Ho, Wo = H // 2, W // 2
    H1, W1 = Ho + 1, Wo + 1          # padded sub-lattice dims (flat row stride = W1)
    Q = Ho * W1                      # pooled positions incl. 1 garbage col per row
    offs = (0, 1, W1, W1 + 1)        # flat shift of each (ah, ch) tap group
    S_pad = _round_up(H1 * W1 + offs[-1], 128)

    # ---- tiny XLA glue (~input-sized): bf16 cast + pad + 2x2 de-interleave ----
    xpad = jnp.pad(x_nchw[0].astype(jnp.bfloat16), ((0, 0), (1, 1), (1, 1)))  # (Cin,H+2,W+2)
    x4 = xpad.reshape(Cin, H1, 2, W1, 2)
    x4 = jnp.transpose(x4, (2, 4, 0, 1, 3)).reshape(4 * Cin, H1 * W1)          # (4*Cin, H1*W1)
    x4 = jnp.pad(x4, ((0, 0), (0, S_pad - H1 * W1)))                           # (4*Cin, S_pad)

    wstack, b4 = _build_stacked_weights(w_oihw, bias, 0.25)

    def kernel(x4_ref, w_ref, b_ref, o_ref):
        # 4 shifted sub-matmuls; the 4 pool phases are stacked on the M axis.
        acc = None
        for g, off in enumerate(offs):
            y = jnp.dot(w_ref[g], x4_ref[:, off:off + Q],
                        preferred_element_type=jnp.float32)
            acc = y if acc is None else acc + y
        acc = acc + b_ref[...]                        # single hoisted broadcast
        out = None
        for ph in range(4):                           # relu per phase, then sum
            r = jnp.maximum(acc[ph * Cout:(ph + 1) * Cout, :], 0.0)
            out = r if out is None else out + r
        o_ref[...] = out

    out_flat = pl.pallas_call(
        kernel,
        out_shape=jax.ShapeDtypeStruct((Cout, Q), jnp.float32),
        grid_spec=pltpu.PrefetchScalarGridSpec(
            num_scalar_prefetch=0,
            grid=(1,),
            in_specs=[
                pl.BlockSpec((4 * Cin, S_pad), lambda i: (0, 0)),       # phase image
                pl.BlockSpec((4, 4 * Cout, 4 * Cin), lambda i: (0, 0, 0)),  # weights
                pl.BlockSpec((4 * Cout, 1), lambda i: (0, 0)),          # bias
            ],
            out_specs=pl.BlockSpec((Cout, Q), lambda i: (0, 0)),
        ),
        compiler_params=pltpu.CompilerParams(dimension_semantics=("arbitrary",)),
    )(x4, wstack, b4)

    # Drop the garbage column per pooled row (cheap reshape + slice in XLA).
    return out_flat.reshape(Cout, Ho, W1)[:, :, :Wo][None]


if __name__ == "__main__":
    key = jax.random.PRNGKey(0)
    kx, kw, kb = jax.random.split(key, 3)
    Cin = Cout = 16
    H = W = 64

    # deterministic params (Conv2d-style uniform init)
    fan_in = Cin * 3 * 3
    bound = 1.0 / (fan_in ** 0.5)
    x = jax.random.normal(kx, (1, Cin, H, W), dtype=jnp.float32)
    w = jax.random.uniform(kw, (Cout, Cin, 3, 3), jnp.float32, -bound, bound)
    b = jax.random.uniform(kb, (Cout,), jnp.float32, -bound, bound)

    out = jax.jit(conv_relu_avgpool)(x, w, b)
    out = jax.block_until_ready(out)

    # Reference: f32 math on the same bf16-rounded x/w the kernel consumes
    # (the kernel does bf16 multiplies with f32 MXU accumulation).
    xb = x.astype(jnp.bfloat16).astype(jnp.float32)
    wb = w.astype(jnp.bfloat16).astype(jnp.float32)
    conv = lax.conv_general_dilated(
        xb, wb, window_strides=(1, 1), padding=((1, 1), (1, 1)),
        dimension_numbers=("NCHW", "OIHW", "NCHW"),
        precision=lax.Precision.HIGHEST)
    conv = conv + b[None, :, None, None]
    relu = jnp.maximum(conv, 0.0)
    ref = lax.reduce_window(relu, 0.0, lax.add,
                            (1, 1, 2, 2), (1, 1, 2, 2), "VALID") / 4.0

    assert out.shape == (1, Cout, H // 2, W // 2), out.shape
    err = float(jnp.max(jnp.abs(out - ref)))
    assert jnp.allclose(out, ref, atol=2e-3, rtol=2e-3), err
    print("KERNEL_OK")
</pallas_src>

<mosaic_0001>
module attributes {stable_mosaic.version = 11 : i64} {
  func.func @kernel(%arg0: i32, %arg1: memref<64x1152xbf16, #tpu.memory_space<vmem>>, %arg2: memref<4x64x64xbf16, #tpu.memory_space<vmem>>, %arg3: memref<64x1xf32, #tpu.memory_space<vmem>>, %arg4: memref<16x1056xf32, #tpu.memory_space<vmem>>) attributes {dimension_semantics = [#tpu.dimension_semantics<arbitrary>], iteration_bounds = array<i64: 1>, scalar_prefetch = 0 : i64, scratch_operands = 0 : i64, tpu.core_type = #tpu.core_type<tc>, window_params = [{pipeline_mode = #tpu.pipeline_mode<synchronous>, transform_indices = @transform_0, window_bounds = array<i64: 64, 1152>}, {pipeline_mode = #tpu.pipeline_mode<synchronous>, transform_indices = @transform_1, window_bounds = array<i64: 4, 64, 64>}, {pipeline_mode = #tpu.pipeline_mode<synchronous>, transform_indices = @transform_2, window_bounds = array<i64: 64, 1>}, {pipeline_mode = #tpu.pipeline_mode<synchronous>, transform_indices = @transform_3, window_bounds = array<i64: 16, 1056>}]} {
    %c0 = arith.constant 0 : index
    %c0_0 = arith.constant 0 : index
    %c0_1 = arith.constant 0 : index
    %0 = vector.load %arg2[%c0, %c0_0, %c0_1] : memref<4x64x64xbf16, #tpu.memory_space<vmem>>, vector<1x64x64xbf16>
    %1 = vector.shape_cast %0 : vector<1x64x64xbf16> to vector<64x64xbf16>
    %c0_2 = arith.constant 0 : index
    %c0_3 = arith.constant 0 : index
    %2 = vector.load %arg1[%c0_2, %c0_3] : memref<64x1152xbf16, #tpu.memory_space<vmem>>, vector<64x1056xbf16>
    %cst = arith.constant dense<0.000000e+00> : vector<64x1056xf32>
    %3 = tpu.matmul %1, %2, %cst {dimension_numbers = #tpu.dot_dimension_numbers<[1], [0], [0], [1], [0, 0, 1, 1], [], []>} : vector<64x64xbf16>, vector<64x1056xbf16>, vector<64x1056xf32> -> vector<64x1056xf32>
    %c1 = arith.constant 1 : index
    %c0_4 = arith.constant 0 : index
    %c0_5 = arith.constant 0 : index
    %4 = vector.load %arg2[%c1, %c0_4, %c0_5] : memref<4x64x64xbf16, #tpu.memory_space<vmem>>, vector<1x64x64xbf16>
    %5 = vector.shape_cast %4 : vector<1x64x64xbf16> to vector<64x64xbf16>
    %c0_6 = arith.constant 0 : index
    %c1_7 = arith.constant 1 : index
    %6 = vector.load %arg1[%c0_6, %c1_7] : memref<64x1152xbf16, #tpu.memory_space<vmem>>, vector<64x1056xbf16>
    %cst_8 = arith.constant dense<0.000000e+00> : vector<64x1056xf32>
    %7 = tpu.matmul %5, %6, %cst_8 {dimension_numbers = #tpu.dot_dimension_numbers<[1], [0], [0], [1], [0, 0, 1, 1], [], []>} : vector<64x64xbf16>, vector<64x1056xbf16>, vector<64x1056xf32> -> vector<64x1056xf32>
    %8 = arith.addf %3, %7 : vector<64x1056xf32>
    %c2 = arith.constant 2 : index
    %c0_9 = arith.constant 0 : index
    %c0_10 = arith.constant 0 : index
    %9 = vector.load %arg2[%c2, %c0_9, %c0_10] : memref<4x64x64xbf16, #tpu.memory_space<vmem>>, vector<1x64x64xbf16>
    %10 = vector.shape_cast %9 : vector<1x64x64xbf16> to vector<64x64xbf16>
    %c0_11 = arith.constant 0 : index
    %c33 = arith.constant 33 : index
    %11 = vector.load %arg1[%c0_11, %c33] : memref<64x1152xbf16, #tpu.memory_space<vmem>>, vector<64x1056xbf16>
    %cst_12 = arith.constant dense<0.000000e+00> : vector<64x1056xf32>
    %12 = tpu.matmul %10, %11, %cst_12 {dimension_numbers = #tpu.dot_dimension_numbers<[1], [0], [0], [1], [0, 0, 1, 1], [], []>} : vector<64x64xbf16>, vector<64x1056xbf16>, vector<64x1056xf32> -> vector<64x1056xf32>
    %13 = arith.addf %8, %12 : vector<64x1056xf32>
    %c3 = arith.constant 3 : index
    %c0_13 = arith.constant 0 : index
    %c0_14 = arith.constant 0 : index
    %14 = vector.load %arg2[%c3, %c0_13, %c0_14] : memref<4x64x64xbf16, #tpu.memory_space<vmem>>, vector<1x64x64xbf16>
    %15 = vector.shape_cast %14 : vector<1x64x64xbf16> to vector<64x64xbf16>
    %c0_15 = arith.constant 0 : index
    %c34 = arith.constant 34 : index
    %16 = vector.load %arg1[%c0_15, %c34] : memref<64x1152xbf16, #tpu.memory_space<vmem>>, vector<64x1056xbf16>
    %cst_16 = arith.constant dense<0.000000e+00> : vector<64x1056xf32>
    %17 = tpu.matmul %15, %16, %cst_16 {dimension_numbers = #tpu.dot_dimension_numbers<[1], [0], [0], [1], [0, 0, 1, 1], [], []>} : vector<64x64xbf16>, vector<64x1056xbf16>, vector<64x1056xf32> -> vector<64x1056xf32>
    %18 = arith.addf %13, %17 : vector<64x1056xf32>
    %c0_17 = arith.constant 0 : index
    %c0_18 = arith.constant 0 : index
    %19 = vector.load %arg3[%c0_17, %c0_18] : memref<64x1xf32, #tpu.memory_space<vmem>>, vector<64x1xf32>
    %20 = vector.broadcast %19 : vector<64x1xf32> to vector<64x1056xf32>
    %21 = arith.addf %18, %20 : vector<64x1056xf32>
    %22 = vector.extract_strided_slice %21 {offsets = [0, 0], sizes = [16, 1056], strides = [1, 1]} : vector<64x1056xf32> to vector<16x1056xf32>
    %cst_19 = arith.constant 0.000000e+00 : f32
    %23 = vector.broadcast %cst_19 : f32 to vector<16x1056xf32>
    %24 = arith.maximumf %22, %23 : vector<16x1056xf32>
    %25 = vector.extract_strided_slice %21 {offsets = [16, 0], sizes = [16, 1056], strides = [1, 1]} : vector<64x1056xf32> to vector<16x1056xf32>
    %cst_20 = arith.constant 0.000000e+00 : f32
    %26 = vector.broadcast %cst_20 : f32 to vector<16x1056xf32>
    %27 = arith.maximumf %25, %26 : vector<16x1056xf32>
    %28 = arith.addf %24, %27 : vector<16x1056xf32>
    %29 = vector.extract_strided_slice %21 {offsets = [32, 0], sizes = [16, 1056], strides = [1, 1]} : vector<64x1056xf32> to vector<16x1056xf32>
    %cst_21 = arith.constant 0.000000e+00 : f32
    %30 = vector.broadcast %cst_21 : f32 to vector<16x1056xf32>
    %31 = arith.maximumf %29, %30 : vector<16x1056xf32>
    %32 = arith.addf %28, %31 : vector<16x1056xf32>
    %33 = vector.extract_strided_slice %21 {offsets = [48, 0], sizes = [16, 1056], strides = [1, 1]} : vector<64x1056xf32> to vector<16x1056xf32>
    %cst_22 = arith.constant 0.000000e+00 : f32
    %34 = vector.broadcast %cst_22 : f32 to vector<16x1056xf32>
    %35 = arith.maximumf %33, %34 : vector<16x1056xf32>
    %36 = arith.addf %32, %35 : vector<16x1056xf32>
    %c0_23 = arith.constant 0 : index
    %c0_24 = arith.constant 0 : index
    %37 = vector.load %arg4[%c0_23, %c0_24] : memref<16x1056xf32, #tpu.memory_space<vmem>>, vector<16x1056xf32>
    tpu.vector_store %arg4[%c0_23, %c0_24], %36 {strides = array<i32>} : memref<16x1056xf32, #tpu.memory_space<vmem>>, vector<16x1056xf32>,
    return
  }
  func.func @transform_0(%arg0: i32) -> (i32, i32) {
    %c0_i32 = arith.constant 0 : i32
    %c0_i32_0 = arith.constant 0 : i32
    %c0_i32_1 = arith.constant 0 : i32
    return %c0_i32, %c0_i32_0 : i32, i32
  }
  func.func @transform_1(%arg0: i32) -> (i32, i32, i32) {
    %c0_i32 = arith.constant 0 : i32
    %c0_i32_0 = arith.constant 0 : i32
    %c0_i32_1 = arith.constant 0 : i32
    %c0_i32_2 = arith.constant 0 : i32
    return %c0_i32, %c0_i32_0, %c0_i32_1 : i32, i32, i32
  }
  func.func @transform_2(%arg0: i32) -> (i32, i32) {
    %c0_i32 = arith.constant 0 : i32
    %c0_i32_0 = arith.constant 0 : i32
    %c0_i32_1 = arith.constant 0 : i32
    return %c0_i32, %c0_i32_0 : i32, i32
  }
  func.func @transform_3(%arg0: i32) -> (i32, i32) {
    %c0_i32 = arith.constant 0 : i32
    %c0_i32_0 = arith.constant 0 : i32
    %c0_i32_1 = arith.constant 0 : i32
    return %c0_i32, %c0_i32_0 : i32, i32
  }
}

</mosaic_0001>

<llo_original>
// kernel: tile.8
$region0: #{tile.8}
  #allocation0 [shape = 's32[1]{0}', space=sflag, size = 0x4, scoped, tag = 'scoped memory for tile.8']
  %s0 = inlined_call_operand.vmem [shape: f32[16], index: 0, kind: input, shape index: {}]
  %s1 = inlined_call_operand.vmem [shape: f32[4,16], index: 1, kind: output, shape index: {}]
  // Predicated region
  $region2: #{tile.8} parent=0 // pred_check
    _
  $region3: #{tile.8} parent=0 // pred_check_branch
    %3 = sbr.rel (0) target = $region5
  $region4: #{tile.8} parent=0 // pred_region
    _
  $region5: #{tile.8} parent=0 // pred_fallthru
    _
  %v4 = vld [vmem:[%s0] ss:$0 sm:$0xff]
  %5 = vst [vmem:[%s1] sm:$0xf] %v4

// kernel: tile.0
$region0: #{tile.0}
  %s0 = inlined_call_operand.vmem [shape: f32[4,16], index: 0, kind: input, shape index: {}]
  %s1 = inlined_call_operand.vmem [shape: f32[64,1], index: 1, kind: output, shape index: {}]
  $region1: #{tile.0} parent=0
    #allocation0 [shape = 'u8[4096]{0}', space=vmem, size = 0x1000, scoped, tag = 'scoped mem for input reshape']
    %s3 = sshll.u32 1, 4
    %s4 = ssub.s32 %s3, 1
    %v5 = vld [vmem:[%s0] sm:%s4]
    %6 = vst [vmem:[#allocation0] sm:%s4] %v5
    %v7 = vld [vmem:[#allocation0] sm:$0xf]
    %vm8 = vcmask 7168
    %9 = vst.msk [vmem:[%s1] ss:$16 sm:$0x3] %vm8, %v7
    %10 = vst.msk [vmem:[%s1] ss:$16 sm:$0xc] %vm8, %v7
    %v11 = vld [vmem:[#allocation0] sm:$0xf]
    %12 = vrot.lane.b32.xlu0 %v11, 127
    %v13 = vpop.permute.xlu0 %12
    %vm14 = vcmask 7168
    %s15 = scalar_lea.vmem %s1, 1
    %16 = vst.msk [vmem:[%s15] ss:$16 sm:$0x3] %vm14, %v13
    %s17 = scalar_lea.vmem %s1, 1
    %18 = vst.msk [vmem:[%s17] ss:$16 sm:$0xc] %vm14, %v13
    %v19 = vld [vmem:[#allocation0] sm:$0xf]
    %20 = vrot.lane.b32.xlu0 %v19, 126
    %v21 = vpop.permute.xlu0 %20
    %vm22 = vcmask 7168
    %s23 = scalar_lea.vmem %s1, 2
    %24 = vst.msk [vmem:[%s23] ss:$16 sm:$0x3] %vm22, %v21
    %s25 = scalar_lea.vmem %s1, 2
    %26 = vst.msk [vmem:[%s25] ss:$16 sm:$0xc] %vm22, %v21
    %v27 = vld [vmem:[#allocation0] sm:$0xf]
    %28 = vrot.lane.b32.xlu0 %v27, 125
    %v29 = vpop.permute.xlu0 %28
    %vm30 = vcmask 7168
    %s31 = scalar_lea.vmem %s1, 3
    %32 = vst.msk [vmem:[%s31] ss:$16 sm:$0x3] %vm30, %v29
    %s33 = scalar_lea.vmem %s1, 3
    %34 = vst.msk [vmem:[%s33] ss:$16 sm:$0xc] %vm30, %v29
    %v35 = vld [vmem:[#allocation0] sm:$0xf]
    %36 = vrot.lane.b32.xlu0 %v35, 124
    %v37 = vpop.permute.xlu0 %36
    %vm38 = vcmask 7168
    %s39 = scalar_lea.vmem %s1, 4
    %40 = vst.msk [vmem:[%s39] ss:$16 sm:$0x3] %vm38, %v37
    %s41 = scalar_lea.vmem %s1, 4
    %42 = vst.msk [vmem:[%s41] ss:$16 sm:$0xc] %vm38, %v37
    %v43 = vld [vmem:[#allocation0] sm:$0xf]
    %44 = vrot.lane.b32.xlu0 %v43, 123
    %v45 = vpop.permute.xlu0 %44
    %vm46 = vcmask 7168
    %s47 = scalar_lea.vmem %s1, 5
    %48 = vst.msk [vmem:[%s47] ss:$16 sm:$0x3] %vm46, %v45
    %s49 = scalar_lea.vmem %s1, 5
    %50 = vst.msk [vmem:[%s49] ss:$16 sm:$0xc] %vm46, %v45
    %v51 = vld [vmem:[#allocation0] sm:$0xf]
    %52 = vrot.lane.b32.xlu0 %v51, 122
    %v53 = vpop.permute.xlu0 %52
    %vm54 = vcmask 7168
    %s55 = scalar_lea.vmem %s1, 6
    %56 = vst.msk [vmem:[%s55] ss:$16 sm:$0x3] %vm54, %v53
    %s57 = scalar_lea.vmem %s1, 6
    %58 = vst.msk [vmem:[%s57] ss:$16 sm:$0xc] %vm54, %v53
    %v59 = vld [vmem:[#allocation0] sm:$0xf]
    %60 = vrot.lane.b32.xlu0 %v59, 121
    %v61 = vpop.permute.xlu0 %60
    %vm62 = vcmask 7168
    %s63 = scalar_lea.vmem %s1, 7
    %64 = vst.msk [vmem:[%s63] ss:$16 sm:$0x3] %vm62, %v61
    %s65 = scalar_lea.vmem %s1, 7
    %66 = vst.msk [vmem:[%s65] ss:$16 sm:$0xc] %vm62, %v61
    %v67 = vld [vmem:[#allocation0] sm:$0xf]
    %68 = vrot.lane.b32.xlu0 %v67, 120
    %v69 = vpop.permute.xlu0 %68
    %vm70 = vcmask 7168
    %s71 = scalar_lea.vmem %s1, 8
    %72 = vst.msk [vmem:[%s71] ss:$16 sm:$0x3] %vm70, %v69
    %s73 = scalar_lea.vmem %s1, 8
    %74 = vst.msk [vmem:[%s73] ss:$16 sm:$0xc] %vm70, %v69
    %v75 = vld [vmem:[#allocation0] sm:$0xf]
    %76 = vrot.lane.b32.xlu0 %v75, 119
    %v77 = vpop.permute.xlu0 %76
    %vm78 = vcmask 7168
    %s79 = scalar_lea.vmem %s1, 9
    %80 = vst.msk [vmem:[%s79] ss:$16 sm:$0x3] %vm78, %v77
    %s81 = scalar_lea.vmem %s1, 9
    %82 = vst.msk [vmem:[%s81] ss:$16 sm:$0xc] %vm78, %v77
    %v83 = vld [vmem:[#allocation0] sm:$0xf]
    %84 = vrot.lane.b32.xlu0 %v83, 118
    %v85 = vpop.permute.xlu0 %84
    %vm86 = vcmask 7168
    %s87 = scalar_lea.vmem %s1, 10
    %88 = vst.msk [vmem:[%s87] ss:$16 sm:$0x3] %vm86, %v85
    %s89 = scalar_lea.vmem %s1, 10
    %90 = vst.msk [vmem:[%s89] ss:$16 sm:$0xc] %vm86, %v85
    %v91 = vld [vmem:[#allocation0] sm:$0xf]
    %92 = vrot.lane.b32.xlu0 %v91, 117
    %v93 = vpop.permute.xlu0 %92
    %vm94 = vcmask 7168
    %s95 = scalar_lea.vmem %s1, 11
    %96 = vst.msk [vmem:[%s95] ss:$16 sm:$0x3] %vm94, %v93
    %s97 = scalar_lea.vmem %s1, 11
    %98 = vst.msk [vmem:[%s97] ss:$16 sm:$0xc] %vm94, %v93
    %v99 = vld [vmem:[#allocation0] sm:$0xf]
    %100 = vrot.lane.b32.xlu0 %v99, 116
    %v101 = vpop.permute.xlu0 %100
    %vm102 = vcmask 7168
    %s103 = scalar_lea.vmem %s1, 12
    %104 = vst.msk [vmem:[%s103] ss:$16 sm:$0x3] %vm102, %v101
    %s105 = scalar_lea.vmem %s1, 12
    %106 = vst.msk [vmem:[%s105] ss:$16 sm:$0xc] %vm102, %v101
    %v107 = vld [vmem:[#allocation0] sm:$0xf]
    %108 = vrot.lane.b32.xlu0 %v107, 115
    %v109 = vpop.permute.xlu0 %108
    %vm110 = vcmask 7168
    %s111 = scalar_lea.vmem %s1, 13
    %112 = vst.msk [vmem:[%s111] ss:$16 sm:$0x3] %vm110, %v109
    %s113 = scalar_lea.vmem %s1, 13
    %114 = vst.msk [vmem:[%s113] ss:$16 sm:$0xc] %vm110, %v109
    %v115 = vld [vmem:[#allocation0] sm:$0xf]
    %116 = vrot.lane.b32.xlu0 %v115, 114
    %v117 = vpop.permute.xlu0 %116
    %vm118 = vcmask 7168
    %s119 = scalar_lea.vmem %s1, 14
    %120 = vst.msk [vmem:[%s119] ss:$16 sm:$0x3] %vm118, %v117
    %s121 = scalar_lea.vmem %s1, 14
    %122 = vst.msk [vmem:[%s121] ss:$16 sm:$0xc] %vm118, %v117
    %v123 = vld [vmem:[#allocation0] sm:$0xf]
    %124 = vrot.lane.b32.xlu0 %v123, 113
    %v125 = vpop.permute.xlu0 %124
    %vm126 = vcmask 7168
    %s127 = scalar_lea.vmem %s1, 15
    %128 = vst.msk [vmem:[%s127] ss:$16 sm:$0x3] %vm126, %v125
    %s129 = scalar_lea.vmem %s1, 15
    %130 = vst.msk [vmem:[%s129] ss:$16 sm:$0xc] %vm126, %v125

// kernel: conv_relu_avgpool.1
$region0: #{conv_relu_avgpool.1}
  #allocation0 [shape = 'u32[]', space=smem, size = 0x4, offset = 0x4, fixed_abs, tag = 'smem constant byte address 0x4 - core index']
  #allocation1 [shape = 'u32[144,128]{1,0:T(1,128)}', space=vmem, size = 0x12000, scoped, tag = 'internal scratch']
  %s0 = inlined_call_operand.vmem [shape: bf16[64,1152], index: 0, kind: input, shape index: {}]
  %s1 = inlined_call_operand.vmem [shape: bf16[4,64,64], index: 1, kind: input, shape index: {}]
  %s2 = inlined_call_operand.vmem [shape: f32[64,1], index: 2, kind: input, shape index: {}]
  %s3 = inlined_call_operand.vmem [shape: f32[16,1056], index: 3, kind: output, shape index: {}]
  %s4 = sld [smem:[#allocation0]]
  $region22: #{conv_relu_avgpool.1} parent=0
    _
  %s6 = ssub.s32 1, %s4
  %s7 = scalar_select 0, %s6, %s4
  // Predicated region
  $region2: #{conv_relu_avgpool.1} parent=0 // pred_check
    _
  $region3: #{conv_relu_avgpool.1} parent=0 // pred_check_branch
    %9 = sbr.rel (0) target = $region5
  $region4: #{conv_relu_avgpool.1} parent=0 // pred_region
    _
  $region5: #{conv_relu_avgpool.1} parent=0 // pred_fallthru
    _
  // Predicated region
  $region6: #{conv_relu_avgpool.1} parent=0 // pred_check
    _
  $region7: #{conv_relu_avgpool.1} parent=0 // pred_check_branch
    %11 = sbr.rel (0) target = $region9
  $region8: #{conv_relu_avgpool.1} parent=0 // pred_region
    _
  $region9: #{conv_relu_avgpool.1} parent=0 // pred_fallthru
    _
  // Predicated region
  $region10: #{conv_relu_avgpool.1} parent=0 // pred_check
    _
  $region11: #{conv_relu_avgpool.1} parent=0 // pred_check_branch
    %13 = sbr.rel (0) target = $region13
  $region12: #{conv_relu_avgpool.1} parent=0 // pred_region
    _
  $region13: #{conv_relu_avgpool.1} parent=0 // pred_fallthru
    _
  %v15 = vld [vmem:[%s1] sm:$0xf]
  %v16 = vld [vmem:[%s1 + $0x4] sm:$0xf]
  %v17 = vld [vmem:[%s1 + $0x8] sm:$0xf]
  %v18 = vld [vmem:[%s1 + $0xc] sm:$0xf]
  %v19 = vld [vmem:[%s1 + $0x10] sm:$0xf]
  %v20 = vld [vmem:[%s1 + $0x14] sm:$0xf]
  %v21 = vld [vmem:[%s1 + $0x18] sm:$0xf]
  %v22 = vld [vmem:[%s1 + $0x1c] sm:$0xf]
  %v23 = vld [vmem:[%s0] sm:$0xff]
  %v24 = vld [vmem:[%s0 + $0x8] sm:$0xff]
  %v25 = vld [vmem:[%s0 + $0x10] sm:$0xff]
  %v26 = vld [vmem:[%s0 + $0x18] sm:$0xff]
  %v27 = vld [vmem:[%s0 + $0x20] sm:$0xf]
  %v28 = vld [vmem:[%s0 + $0x24] sm:$0xff]
  %v29 = vld [vmem:[%s0 + $0x2c] sm:$0xff]
  %v30 = vld [vmem:[%s0 + $0x34] sm:$0xff]
  %v31 = vld [vmem:[%s0 + $0x3c] sm:$0xff]
  %v32 = vld [vmem:[%s0 + $0x44] sm:$0xf]
  %v33 = vld [vmem:[%s0 + $0x48] sm:$0xff]
  %v34 = vld [vmem:[%s0 + $0x50] sm:$0xff]
  %v35 = vld [vmem:[%s0 + $0x58] sm:$0xff]
  %v36 = vld [vmem:[%s0 + $0x60] sm:$0xff]
  %v37 = vld [vmem:[%s0 + $0x68] sm:$0xf]
  %v38 = vld [vmem:[%s0 + $0x6c] sm:$0xff]
  %v39 = vld [vmem:[%s0 + $0x74] sm:$0xff]
  %v40 = vld [vmem:[%s0 + $0x7c] sm:$0xff]
  %v41 = vld [vmem:[%s0 + $0x84] sm:$0xff]
  %v42 = vld [vmem:[%s0 + $0x8c] sm:$0xf]
  %v43 = vld [vmem:[%s0 + $0x90] sm:$0xff]
  %v44 = vld [vmem:[%s0 + $0x98] sm:$0xff]
  %v45 = vld [vmem:[%s0 + $0xa0] sm:$0xff]
  %v46 = vld [vmem:[%s0 + $0xa8] sm:$0xff]
  %v47 = vld [vmem:[%s0 + $0xb0] sm:$0xf]
  %v48 = vld [vmem:[%s0 + $0xb4] sm:$0xff]
  %v49 = vld [vmem:[%s0 + $0xbc] sm:$0xff]
  %v50 = vld [vmem:[%s0 + $0xc4] sm:$0xff]
  %v51 = vld [vmem:[%s0 + $0xcc] sm:$0xff]
  %v52 = vld [vmem:[%s0 + $0xd4] sm:$0xf]
  %v53 = vld [vmem:[%s0 + $0xd8] sm:$0xff]
  %v54 = vld [vmem:[%s0 + $0xe0] sm:$0xff]
  %v55 = vld [vmem:[%s0 + $0xe8] sm:$0xff]
  %v56 = vld [vmem:[%s0 + $0xf0] sm:$0xff]
  %v57 = vld [vmem:[%s0 + $0xf8] sm:$0xf]
  %v58 = vld [vmem:[%s0 + $0xfc] sm:$0xff]
  %v59 = vld [vmem:[%s0 + $0x104] sm:$0xff]
  %v60 = vld [vmem:[%s0 + $0x10c] sm:$0xff]
  %v61 = vld [vmem:[%s0 + $0x114] sm:$0xff]
  %v62 = vld [vmem:[%s0 + $0x11c] sm:$0xf]
  %s63 = scalar_lea.vmem %s1, 32
  %v64 = vld [vmem:[%s63] sm:$0xf]
  %v65 = vld [vmem:[%s63 + $0x4] sm:$0xf]
  %v66 = vld [vmem:[%s63 + $0x8] sm:$0xf]
  %v67 = vld [vmem:[%s63 + $0xc] sm:$0xf]
  %v68 = vld [vmem:[%s63 + $0x10] sm:$0xf]
  %v69 = vld [vmem:[%s63 + $0x14] sm:$0xf]
  %v70 = vld [vmem:[%s63 + $0x18] sm:$0xf]
  %v71 = vld [vmem:[%s63 + $0x1c] sm:$0xf]
  %v80 = vunpack.c.l.b16 %v64
  %v81 = vunpack.c.l.b16 %v65
  %v82 = vunpack.c.l.b16 %v66
  %v83 = vunpack.c.l.b16 %v67
  %v84 = vunpack.c.l.b16 %v68
  %v85 = vunpack.c.l.b16 %v69
  %v86 = vunpack.c.l.b16 %v70
  %v87 = vunpack.c.l.b16 %v71
  %v88 = vpack.c.b16 %v81, %v80
  %v89 = vpack.c.b16 %v83, %v82
  %v90 = vpack.c.b16 %v85, %v84
  %v91 = vpack.c.b16 %v87, %v86
  %v132 = vunpack.c.l.b16 %v23
  %v133 = vunpack.c.h.b16 %v23
  %v134 = vunpack.c.l.b16 %v24
  %v135 = vunpack.c.h.b16 %v24
  %v136 = vunpack.c.l.b16 %v25
  %v137 = vunpack.c.h.b16 %v25
  %v138 = vunpack.c.l.b16 %v26
  %v139 = vunpack.c.h.b16 %v26
  %v140 = vunpack.c.l.b16 %v27
  %v141 = vunpack.c.l.b16 %v28
  %v142 = vunpack.c.h.b16 %v28
  %v143 = vunpack.c.l.b16 %v29
  %v144 = vunpack.c.h.b16 %v29
  %v145 = vunpack.c.l.b16 %v30
  %v146 = vunpack.c.h.b16 %v30
  %v147 = vunpack.c.l.b16 %v31
  %v148 = vunpack.c.h.b16 %v31
  %v149 = vunpack.c.l.b16 %v32
  %v150 = vunpack.c.l.b16 %v33
  %v151 = vunpack.c.h.b16 %v33
  %v152 = vunpack.c.l.b16 %v34
  %v153 = vunpack.c.h.b16 %v34
  %v154 = vunpack.c.l.b16 %v35
  %v155 = vunpack.c.h.b16 %v35
  %v156 = vunpack.c.l.b16 %v36
  %v157 = vunpack.c.h.b16 %v36
  %v158 = vunpack.c.l.b16 %v37
  %v159 = vunpack.c.l.b16 %v38
  %v160 = vunpack.c.h.b16 %v38
  %v161 = vunpack.c.l.b16 %v39
  %v162 = vunpack.c.h.b16 %v39
  %v163 = vunpack.c.l.b16 %v40
  %v164 = vunpack.c.h.b16 %v40
  %v165 = vunpack.c.l.b16 %v41
  %v166 = vunpack.c.h.b16 %v41
  %v167 = vunpack.c.l.b16 %v42
  %v168 = vunpack.c.l.b16 %v43
  %v169 = vunpack.c.h.b16 %v43
  %v170 = vunpack.c.l.b16 %v44
  %v171 = vunpack.c.h.b16 %v44
  %v172 = vunpack.c.l.b16 %v45
  %v173 = vunpack.c.h.b16 %v45
  %v174 = vunpack.c.l.b16 %v46
  %v175 = vunpack.c.h.b16 %v46
  %v176 = vunpack.c.l.b16 %v47
  %v177 = vunpack.c.l.b16 %v48
  %v178 = vunpack.c.h.b16 %v48
  %v179 = vunpack.c.l.b16 %v49
  %v180 = vunpack.c.h.b16 %v49
  %v181 = vunpack.c.l.b16 %v50
  %v182 = vunpack.c.h.b16 %v50
  %v183 = vunpack.c.l.b16 %v51
  %v184 = vunpack.c.h.b16 %v51
  %v185 = vunpack.c.l.b16 %v52
  %v186 = vunpack.c.l.b16 %v53
  %v187 = vunpack.c.h.b16 %v53
  %v188 = vunpack.c.l.b16 %v54
  %v189 = vunpack.c.h.b16 %v54
  %v190 = vunpack.c.l.b16 %v55
  %v191 = vunpack.c.h.b16 %v55
  %v192 = vunpack.c.l.b16 %v56
  %v193 = vunpack.c.h.b16 %v56
  %v194 = vunpack.c.l.b16 %v57
  %v195 = vunpack.c.l.b16 %v58
  %v196 = vunpack.c.h.b16 %v58
  %v197 = vunpack.c.l.b16 %v59
  %v198 = vunpack.c.h.b16 %v59
  %v199 = vunpack.c.l.b16 %v60
  %v200 = vunpack.c.h.b16 %v60
  %v201 = vunpack.c.l.b16 %v61
  %v202 = vunpack.c.h.b16 %v61
  %v203 = vunpack.c.l.b16 %v62
  %v204 = vpack.c.b16 %v141, %v132
  %v205 = vpack.c.b16 %v142, %v133
  %v206 = vpack.c.b16 %v143, %v134
  %v207 = vpack.c.b16 %v144, %v135
  %v208 = vpack.c.b16 %v145, %v136
  %v209 = vpack.c.b16 %v146, %v137
  %v210 = vpack.c.b16 %v147, %v138
  %v211 = vpack.c.b16 %v148, %v139
  %v212 = vpack.c.b16 %v149, %v140
  %v213 = vpack.c.b16 %v159, %v150
  %v214 = vpack.c.b16 %v160, %v151
  %v215 = vpack.c.b16 %v161, %v152
  %v216 = vpack.c.b16 %v162, %v153
  %v217 = vpack.c.b16 %v163, %v154
  %v218 = vpack.c.b16 %v164, %v155
  %v219 = vpack.c.b16 %v165, %v156
  %v220 = vpack.c.b16 %v166, %v157
  %v221 = vpack.c.b16 %v167, %v158
  %v222 = vpack.c.b16 %v177, %v168
  %v223 = vpack.c.b16 %v178, %v169
  %v224 = vpack.c.b16 %v179, %v170
  %v225 = vpack.c.b16 %v180, %v171
  %v226 = vpack.c.b16 %v181, %v172
  %v227 = vpack.c.b16 %v182, %v173
  %v228 = vpack.c.b16 %v183, %v174
  %v229 = vpack.c.b16 %v184, %v175
  %v230 = vpack.c.b16 %v185, %v176
  %v231 = vpack.c.b16 %v195, %v186
  %v232 = vpack.c.b16 %v196, %v187
  %v233 = vpack.c.b16 %v197, %v188
  %v234 = vpack.c.b16 %v198, %v189
  %v235 = vpack.c.b16 %v199, %v190
  %v236 = vpack.c.b16 %v200, %v191
  %v237 = vpack.c.b16 %v201, %v192
  %v238 = vpack.c.b16 %v202, %v193
  %v239 = vpack.c.b16 %v203, %v194
  %240 = vrot.lane.b32.xlu0 %v204, 127
  %v241 = vpop.permute.xlu0 %240
  %242 = vrot.lane.b32.xlu0 %v205, 127
  %v243 = vpop.permute.xlu0 %242
  %244 = vrot.lane.b32.xlu0 %v206, 127
  %v245 = vpop.permute.xlu0 %244
  %246 = vrot.lane.b32.xlu0 %v207, 127
  %v247 = vpop.permute.xlu0 %246
  %248 = vrot.lane.b32.xlu0 %v208, 127
  %v249 = vpop.permute.xlu0 %248
  %250 = vrot.lane.b32.xlu0 %v209, 127
  %v251 = vpop.permute.xlu0 %250
  %252 = vrot.lane.b32.xlu0 %v210, 127
  %v253 = vpop.permute.xlu0 %252
  %254 = vrot.lane.b32.xlu0 %v211, 127
  %v255 = vpop.permute.xlu0 %254
  %256 = vrot.lane.b32.xlu0 %v212, 127
  %v257 = vpop.permute.xlu0 %256
  %258 = vrot.lane.b32.xlu0 %v213, 127
  %v259 = vpop.permute.xlu0 %258
  %260 = vrot.lane.b32.xlu0 %v214, 127
  %v261 = vpop.permute.xlu0 %260
  %262 = vrot.lane.b32.xlu0 %v215, 127
  %v263 = vpop.permute.xlu0 %262
  %264 = vrot.lane.b32.xlu0 %v216, 127
  %v265 = vpop.permute.xlu0 %264
  %266 = vrot.lane.b32.xlu0 %v217, 127
  %v267 = vpop.permute.xlu0 %266
  %268 = vrot.lane.b32.xlu0 %v218, 127
  %v269 = vpop.permute.xlu0 %268
  %270 = vrot.lane.b32.xlu0 %v219, 127
  %v271 = vpop.permute.xlu0 %270
  %272 = vrot.lane.b32.xlu0 %v220, 127
  %v273 = vpop.permute.xlu0 %272
  %274 = vrot.lane.b32.xlu0 %v221, 127
  %v275 = vpop.permute.xlu0 %274
  %276 = vrot.lane.b32.xlu0 %v222, 127
  %v277 = vpop.permute.xlu0 %276
  %278 = vrot.lane.b32.xlu0 %v223, 127
  %v279 = vpop.permute.xlu0 %278
  %280 = vrot.lane.b32.xlu0 %v224, 127
  %v281 = vpop.permute.xlu0 %280
  %282 = vrot.lane.b32.xlu0 %v225, 127
  %v283 = vpop.permute.xlu0 %282
  %284 = vrot.lane.b32.xlu0 %v226, 127
  %v285 = vpop.permute.xlu0 %284
  %286 = vrot.lane.b32.xlu0 %v227, 127
  %v287 = vpop.permute.xlu0 %286
  %288 = vrot.lane.b32.xlu0 %v228, 127
  %v289 = vpop.permute.xlu0 %288
  %290 = vrot.lane.b32.xlu0 %v229, 127
  %v291 = vpop.permute.xlu0 %290
  %292 = vrot.lane.b32.xlu0 %v230, 127
  %v293 = vpop.permute.xlu0 %292
  %294 = vrot.lane.b32.xlu0 %v231, 127
  %v295 = vpop.permute.xlu0 %294
  %296 = vrot.lane.b32.xlu0 %v232, 127
  %v297 = vpop.permute.xlu0 %296
  %298 = vrot.lane.b32.xlu0 %v233, 127
  %v299 = vpop.permute.xlu0 %298
  %300 = vrot.lane.b32.xlu0 %v234, 127
  %v301 = vpop.permute.xlu0 %300
  %302 = vrot.lane.b32.xlu0 %v235, 127
  %v303 = vpop.permute.xlu0 %302
  %304 = vrot.lane.b32.xlu0 %v236, 127
  %v305 = vpop.permute.xlu0 %304
  %306 = vrot.lane.b32.xlu0 %v237, 127
  %v307 = vpop.permute.xlu0 %306
  %308 = vrot.lane.b32.xlu0 %v238, 127
  %v309 = vpop.permute.xlu0 %308
  %310 = vrot.lane.b32.xlu0 %v239, 127
  %v311 = vpop.permute.xlu0 %310
  %vm312 = vcmask 1039360
  %v313 = vsel %vm312, %v241, %v243
  %v314 = vsel %vm312, %v243, %v245
  %v315 = vsel %vm312, %v245, %v247
  %v316 = vsel %vm312, %v247, %v249
  %v317 = vsel %vm312, %v249, %v251
  %v318 = vsel %vm312, %v251, %v253
  %v319 = vsel %vm312, %v253, %v255
  %v320 = vsel %vm312, %v255, %v257
  %v321 = vsel %vm312, %v259, %v261
  %v322 = vsel %vm312, %v261, %v263
  %v323 = vsel %vm312, %v263, %v265
  %v324 = vsel %vm312, %v265, %v267
  %v325 = vsel %vm312, %v267, %v269
  %v326 = vsel %vm312, %v269, %v271
  %v327 = vsel %vm312, %v271, %v273
  %v328 = vsel %vm312, %v273, %v275
  %v329 = vsel %vm312, %v277, %v279
  %v330 = vsel %vm312, %v279, %v281
  %v331 = vsel %vm312, %v281, %v283
  %v332 = vsel %vm312, %v283, %v285
  %v333 = vsel %vm312, %v285, %v287
  %v334 = vsel %vm312, %v287, %v289
  %v335 = vsel %vm312, %v289, %v291
  %v336 = vsel %vm312, %v291, %v293
  %v337 = vsel %vm312, %v295, %v297
  %v338 = vsel %vm312, %v297, %v299
  %v339 = vsel %vm312, %v299, %v301
  %v340 = vsel %vm312, %v301, %v303
  %v341 = vsel %vm312, %v303, %v305
  %v342 = vsel %vm312, %v305, %v307
  %v343 = vsel %vm312, %v307, %v309
  %v344 = vsel %vm312, %v309, %v311
  %vm381 = vcmask 523264
  %v383 = vsel %vm381, %v88, 0
  %v386 = vsel %vm381, %v89, 0
  %v389 = vsel %vm381, %v90, 0
  %v392 = vsel %vm381, %v91, 0
  %394 = vmatprep.subr.bf16.mxu0 0
  %395 = vmatpush1.bf16.msra.mxu0 0
  %396 = vmatprep.subr.bf16.mxu0 0
  %397 = vmatpush1.bf16.msra.mxu0 0
  %398 = vmatprep.subr.bf16.mxu0 0
  %399 = vmatpush1.bf16.msra.mxu0 0
  %400 = vmatprep.subr.bf16.mxu0 0
  %401 = vmatpush1.bf16.msra.mxu0 0
  %402 = vmatprep.subr.bf16.mxu0 %v338
  %403 = vmatpush1.bf16.msra.mxu0 %v337
  %404 = vmatprep.subr.bf16.mxu0 %v330
  %405 = vmatpush1.bf16.msra.mxu0 %v329
  %406 = vmatprep.subr.bf16.mxu0 %v322
  %407 = vmatpush1.bf16.msra.mxu0 %v321
  %408 = vmatprep.subr.bf16.mxu0 %v314
  %409 = vmatpush1.bf16.msra.mxu0 %v313
  %410 = vmatprep.subr.bf16.mxu0 0
  %411 = vmatpush2.bf16.msra.mxu0 0
  %412 = vmatprep.subr.bf16.mxu0 0
  %413 = vmatpush2.bf16.msra.mxu0 0
  %414 = vmatprep.subr.bf16.mxu0 0
  %415 = vmatpush2.bf16.msra.mxu0 0
  %416 = vmatprep.subr.bf16.mxu0 0
  %417 = vmatpush2.bf16.msra.mxu0 0
  %418 = vmatprep.subr.bf16.mxu0 0
  %419 = vmatpush2.bf16.msra.mxu0 0
  %420 = vmatprep.subr.bf16.mxu0 0
  %421 = vmatpush2.bf16.msra.mxu0 0
  %422 = vmatprep.subr.bf16.mxu0 0
  %423 = vmatpush2.bf16.msra.mxu0 0
  %424 = vmatprep.subr.bf16.mxu0 0
  %425 = vmatpush2.bf16.msra.mxu0 0
  %426 = vmatprep.mubr.bf16.mxu0 0
  %427 = vmatmul.mubr.bf16.gmra.mxu0 %v383
  %v428 = vpop.f32.mrf.mxu0
  %v429 = vadd.f32 0.0, %v428
  %v430 = vpop.f32.mrf.mxu0
  %v431 = vadd.f32 0.0, %v430
  %v432 = vpop.f32.mrf.mxu0
  %v433 = vadd.f32 0.0, %v432
  %v434 = vpop.f32.mrf.mxu0
  %v435 = vadd.f32 0.0, %v434
  %436 = vmatprep.mubr.bf16.mxu0 0
  %437 = vmatmul.mubr.bf16.gmra.mxu0 %v386
  %v438 = vpop.f32.mrf.mxu0
  %v439 = vadd.f32 0.0, %v438
  %v440 = vpop.f32.mrf.mxu0
  %v441 = vadd.f32 0.0, %v440
  %v442 = vpop.f32.mrf.mxu0
  %v443 = vadd.f32 0.0, %v442
  %v444 = vpop.f32.mrf.mxu0
  %v445 = vadd.f32 0.0, %v444
  %446 = vmatprep.mubr.bf16.mxu0 0
  %447 = vmatmul.mubr.bf16.gmra.mxu0 %v389
  %v448 = vpop.f32.mrf.mxu0
  %v449 = vadd.f32 0.0, %v448
  %v450 = vpop.f32.mrf.mxu0
  %v451 = vadd.f32 0.0, %v450
  %v452 = vpop.f32.mrf.mxu0
  %v453 = vadd.f32 0.0, %v452
  %v454 = vpop.f32.mrf.mxu0
  %v455 = vadd.f32 0.0, %v454
  %456 = vmatprep.mubr.bf16.mxu0 0
  %457 = vmatmul.mubr.bf16.gmra.mxu0 %v392
  %v458 = vpop.f32.mrf.mxu0
  %v459 = vadd.f32 0.0, %v458
  %v460 = vpop.f32.mrf.mxu0
  %v461 = vadd.f32 0.0, %v460
  %v462 = vpop.f32.mrf.mxu0
  %v463 = vadd.f32 0.0, %v462
  %v464 = vpop.f32.mrf.mxu0
  %v465 = vadd.f32 0.0, %v464
  %466 = vdwg.mxu0
  %467 = vmatprep.subr.bf16.mxu0 0
  %468 = vmatpush1.bf16.msra.mxu0 0
  %469 = vmatprep.subr.bf16.mxu0 0
  %470 = vmatpush1.bf16.msra.mxu0 0
  %471 = vmatprep.subr.bf16.mxu0 0
  %472 = vmatpush1.bf16.msra.mxu0 0
  %473 = vmatprep.subr.bf16.mxu0 0
  %474 = vmatpush1.bf16.msra.mxu0 0
  %475 = vmatprep.subr.bf16.mxu0 %v340
  %476 = vmatpush1.bf16.msra.mxu0 %v339
  %477 = vmatprep.subr.bf16.mxu0 %v332
  %478 = vmatpush1.bf16.msra.mxu0 %v331
  %479 = vmatprep.subr.bf16.mxu0 %v324
  %480 = vmatpush1.bf16.msra.mxu0 %v323
  %481 = vmatprep.subr.bf16.mxu0 %v316
  %482 = vmatpush1.bf16.msra.mxu0 %v315
  %483 = vmatprep.subr.bf16.mxu0 0
  %484 = vmatpush2.bf16.msra.mxu0 0
  %485 = vmatprep.subr.bf16.mxu0 0
  %486 = vmatpush2.bf16.msra.mxu0 0
  %487 = vmatprep.subr.bf16.mxu0 0
  %488 = vmatpush2.bf16.msra.mxu0 0
  %489 = vmatprep.subr.bf16.mxu0 0
  %490 = vmatpush2.bf16.msra.mxu0 0
  %491 = vmatprep.subr.bf16.mxu0 0
  %492 = vmatpush2.bf16.msra.mxu0 0
  %493 = vmatprep.subr.bf16.mxu0 0
  %494 = vmatpush2.bf16.msra.mxu0 0
  %495 = vmatprep.subr.bf16.mxu0 0
  %496 = vmatpush2.bf16.msra.mxu0 0
  %497 = vmatprep.subr.bf16.mxu0 0
  %498 = vmatpush2.bf16.msra.mxu0 0
  %499 = vmatprep.mubr.bf16.mxu0 0
  %500 = vmatmul.mubr.bf16.gmra.mxu0 %v383
  %v501 = vpop.f32.mrf.mxu0
  %v502 = vadd.f32 0.0, %v501
  %v503 = vpop.f32.mrf.mxu0
  %v504 = vadd.f32 0.0, %v503
  %v505 = vpop.f32.mrf.mxu0
  %v506 = vadd.f32 0.0, %v505
  %v507 = vpop.f32.mrf.mxu0
  %v508 = vadd.f32 0.0, %v507
  %509 = vmatprep.mubr.bf16.mxu0 0
  %510 = vmatmul.mubr.bf16.gmra.mxu0 %v386
  %v511 = vpop.f32.mrf.mxu0
  %v512 = vadd.f32 0.0, %v511
  %v513 = vpop.f32.mrf.mxu0
  %v514 = vadd.f32 0.0, %v513
  %v515 = vpop.f32.mrf.mxu0
  %v516 = vadd.f32 0.0, %v515
  %v517 = vpop.f32.mrf.mxu0
  %v518 = vadd.f32 0.0, %v517
  %519 = vmatprep.mubr.bf16.mxu0 0
  %520 = vmatmul.mubr.bf16.gmra.mxu0 %v389
  %v521 = vpop.f32.mrf.mxu0
  %v522 = vadd.f32 0.0, %v521
  %v523 = vpop.f32.mrf.mxu0
  %v524 = vadd.f32 0.0, %v523
  %v525 = vpop.f32.mrf.mxu0
  %v526 = vadd.f32 0.0, %v525
  %v527 = vpop.f32.mrf.mxu0
  %v528 = vadd.f32 0.0, %v527
  %529 = vmatprep.mubr.bf16.mxu0 0
  %530 = vmatmul.mubr.bf16.gmra.mxu0 %v392
  %v531 = vpop.f32.mrf.mxu0
  %v532 = vadd.f32 0.0, %v531
  %v533 = vpop.f32.mrf.mxu0
  %v534 = vadd.f32 0.0, %v533
  %v535 = vpop.f32.mrf.mxu0
  %v536 = vadd.f32 0.0, %v535
  %v537 = vpop.f32.mrf.mxu0
  %v538 = vadd.f32 0.0, %v537
  %539 = vdwg.mxu0
  %540 = vmatprep.subr.bf16.mxu0 0
  %541 = vmatpush1.bf16.msra.mxu0 0
  %542 = vmatprep.subr.bf16.mxu0 0
  %543 = vmatpush1.bf16.msra.mxu0 0
  %544 = vmatprep.subr.bf16.mxu0 0
  %545 = vmatpush1.bf16.msra.mxu0 0
  %546 = vmatprep.subr.bf16.mxu0 0
  %547 = vmatpush1.bf16.msra.mxu0 0
  %548 = vmatprep.subr.bf16.mxu0 %v342
  %549 = vmatpush1.bf16.msra.mxu0 %v341
  %550 = vmatprep.subr.bf16.mxu0 %v334
  %551 = vmatpush1.bf16.msra.mxu0 %v333
  %552 = vmatprep.subr.bf16.mxu0 %v326
  %553 = vmatpush1.bf16.msra.mxu0 %v325
  %554 = vmatprep.subr.bf16.mxu0 %v318
  %555 = vmatpush1.bf16.msra.mxu0 %v317
  %556 = vmatprep.subr.bf16.mxu0 0
  %557 = vmatpush2.bf16.msra.mxu0 0
  %558 = vmatprep.subr.bf16.mxu0 0
  %559 = vmatpush2.bf16.msra.mxu0 0
  %560 = vmatprep.subr.bf16.mxu0 0
  %561 = vmatpush2.bf16.msra.mxu0 0
  %562 = vmatprep.subr.bf16.mxu0 0
  %563 = vmatpush2.bf16.msra.mxu0 0
  %564 = vmatprep.subr.bf16.mxu0 0
  %565 = vmatpush2.bf16.msra.mxu0 0
  %566 = vmatprep.subr.bf16.mxu0 0
  %567 = vmatpush2.bf16.msra.mxu0 0
  %568 = vmatprep.subr.bf16.mxu0 0
  %569 = vmatpush2.bf16.msra.mxu0 0
  %570 = vmatprep.subr.bf16.mxu0 0
  %571 = vmatpush2.bf16.msra.mxu0 0
  %572 = vmatprep.mubr.bf16.mxu0 0
  %573 = vmatmul.mubr.bf16.gmra.mxu0 %v383
  %v574 = vpop.f32.mrf.mxu0
  %v575 = vadd.f32 0.0, %v574
  %v576 = vpop.f32.mrf.mxu0
  %v577 = vadd.f32 0.0, %v576
  %v578 = vpop.f32.mrf.mxu0
  %v579 = vadd.f32 0.0, %v578
  %v580 = vpop.f32.mrf.mxu0
  %v581 = vadd.f32 0.0, %v580
  %582 = vmatprep.mubr.bf16.mxu0 0
  %583 = vmatmul.mubr.bf16.gmra.mxu0 %v386
  %v584 = vpop.f32.mrf.mxu0
  %v585 = vadd.f32 0.0, %v584
  %v586 = vpop.f32.mrf.mxu0
  %v587 = vadd.f32 0.0, %v586
  %v588 = vpop.f32.mrf.mxu0
  %v589 = vadd.f32 0.0, %v588
  %v590 = vpop.f32.mrf.mxu0
  %v591 = vadd.f32 0.0, %v590
  %592 = vmatprep.mubr.bf16.mxu0 0
  %593 = vmatmul.mubr.bf16.gmra.mxu0 %v389
  %v594 = vpop.f32.mrf.mxu0
  %v595 = vadd.f32 0.0, %v594
  %v596 = vpop.f32.mrf.mxu0
  %v597 = vadd.f32 0.0, %v596
  %v598 = vpop.f32.mrf.mxu0
  %v599 = vadd.f32 0.0, %v598
  %v600 = vpop.f32.mrf.mxu0
  %v601 = vadd.f32 0.0, %v600
  %602 = vmatprep.mubr.bf16.mxu0 0
  %603 = vmatmul.mubr.bf16.gmra.mxu0 %v392
  %v604 = vpop.f32.mrf.mxu0
  %v605 = vadd.f32 0.0, %v604
  %v606 = vpop.f32.mrf.mxu0
  %v607 = vadd.f32 0.0, %v606
  %v608 = vpop.f32.mrf.mxu0
  %v609 = vadd.f32 0.0, %v608
  %v610 = vpop.f32.mrf.mxu0
  %v611 = vadd.f32 0.0, %v610
  %612 = vdwg.mxu0
  %613 = vmatprep.subr.bf16.mxu0 0
  %614 = vmatpush1.bf16.msra.mxu0 0
  %615 = vmatprep.subr.bf16.mxu0 0
  %616 = vmatpush1.bf16.msra.mxu0 0
  %617 = vmatprep.subr.bf16.mxu0 0
  %618 = vmatpush1.bf16.msra.mxu0 0
  %619 = vmatprep.subr.bf16.mxu0 0
  %620 = vmatpush1.bf16.msra.mxu0 0
  %621 = vmatprep.subr.bf16.mxu0 %v344
  %622 = vmatpush1.bf16.msra.mxu0 %v343
  %623 = vmatprep.subr.bf16.mxu0 %v336
  %624 = vmatpush1.bf16.msra.mxu0 %v335
  %625 = vmatprep.subr.bf16.mxu0 %v328
  %626 = vmatpush1.bf16.msra.mxu0 %v327
  %627 = vmatprep.subr.bf16.mxu0 %v320
  %628 = vmatpush1.bf16.msra.mxu0 %v319
  %629 = vmatprep.subr.bf16.mxu0 0
  %630 = vmatpush2.bf16.msra.mxu0 0
  %631 = vmatprep.subr.bf16.mxu0 0
  %632 = vmatpush2.bf16.msra.mxu0 0
  %633 = vmatprep.subr.bf16.mxu0 0
  %634 = vmatpush2.bf16.msra.mxu0 0
  %635 = vmatprep.subr.bf16.mxu0 0
  %636 = vmatpush2.bf16.msra.mxu0 0
  %637 = vmatprep.subr.bf16.mxu0 0
  %638 = vmatpush2.bf16.msra.mxu0 0
  %639 = vmatprep.subr.bf16.mxu0 0
  %640 = vmatpush2.bf16.msra.mxu0 0
  %641 = vmatprep.subr.bf16.mxu0 0
  %642 = vmatpush2.bf16.msra.mxu0 0
  %643 = vmatprep.subr.bf16.mxu0 0
  %644 = vmatpush2.bf16.msra.mxu0 0
  %645 = vmatprep.mubr.bf16.mxu0 0
  %646 = vmatmul.mubr.bf16.gmra.mxu0 %v383
  %v647 = vpop.f32.mrf.mxu0
  %v648 = vadd.f32 0.0, %v647
  %v649 = vpop.f32.mrf.mxu0
  %v650 = vadd.f32 0.0, %v649
  %v651 = vpop.f32.mrf.mxu0
  %v652 = vadd.f32 0.0, %v651
  %v653 = vpop.f32.mrf.mxu0
  %v654 = vadd.f32 0.0, %v653
  %655 = vmatprep.mubr.bf16.mxu0 0
  %656 = vmatmul.mubr.bf16.gmra.mxu0 %v386
  %v657 = vpop.f32.mrf.mxu0
  %v658 = vadd.f32 0.0, %v657
  %v659 = vpop.f32.mrf.mxu0
  %v660 = vadd.f32 0.0, %v659
  %v661 = vpop.f32.mrf.mxu0
  %v662 = vadd.f32 0.0, %v661
  %v663 = vpop.f32.mrf.mxu0
  %v664 = vadd.f32 0.0, %v663
  %665 = vmatprep.mubr.bf16.mxu0 0
  %666 = vmatmul.mubr.bf16.gmra.mxu0 %v389
  %v667 = vpop.f32.mrf.mxu0
  %v668 = vadd.f32 0.0, %v667
  %v669 = vpop.f32.mrf.mxu0
  %v670 = vadd.f32 0.0, %v669
  %v671 = vpop.f32.mrf.mxu0
  %v672 = vadd.f32 0.0, %v671
  %v673 = vpop.f32.mrf.mxu0
  %v674 = vadd.f32 0.0, %v673
  %675 = vmatprep.mubr.bf16.mxu0 0
  %676 = vmatmul.mubr.bf16.gmra.mxu0 %v392
  %v677 = vpop.f32.mrf.mxu0
  %v678 = vadd.f32 0.0, %v677
  %v679 = vpop.f32.mrf.mxu0
  %v680 = vadd.f32 0.0, %v679
  %v681 = vpop.f32.mrf.mxu0
  %v682 = vadd.f32 0.0, %v681
  %v683 = vpop.f32.mrf.mxu0
  %v684 = vadd.f32 0.0, %v683
  %685 = vdwg.mxu0
  %686 = vmatprep.subr.bf16.mxu0 0
  %687 = vmatpush1.bf16.msra.mxu0 0
  %688 = vmatprep.subr.bf16.mxu0 0
  %689 = vmatpush1.bf16.msra.mxu0 0
  %690 = vmatprep.subr.bf16.mxu0 0
  %691 = vmatpush1.bf16.msra.mxu0 0
  %692 = vmatprep.subr.bf16.mxu0 0
  %693 = vmatpush1.bf16.msra.mxu0 0
  %694 = vmatprep.subr.bf16.mxu0 0
  %695 = vmatpush1.bf16.msra.mxu0 %v311
  %696 = vmatprep.subr.bf16.mxu0 0
  %697 = vmatpush1.bf16.msra.mxu0 %v293
  %698 = vmatprep.subr.bf16.mxu0 0
  %699 = vmatpush1.bf16.msra.mxu0 %v275
  %700 = vmatprep.subr.bf16.mxu0 0
  %701 = vmatpush1.bf16.msra.mxu0 %v257
  %702 = vmatprep.subr.bf16.mxu0 0
  %703 = vmatpush2.bf16.msra.mxu0 0
  %704 = vmatprep.subr.bf16.mxu0 0
  %705 = vmatpush2.bf16.msra.mxu0 0
  %706 = vmatprep.subr.bf16.mxu0 0
  %707 = vmatpush2.bf16.msra.mxu0 0
  %708 = vmatprep.subr.bf16.mxu0 0
  %709 = vmatpush2.bf16.msra.mxu0 0
  %710 = vmatprep.subr.bf16.mxu0 0
  %711 = vmatpush2.bf16.msra.mxu0 0
  %712 = vmatprep.subr.bf16.mxu0 0
  %713 = vmatpush2.bf16.msra.mxu0 0
  %714 = vmatprep.subr.bf16.mxu0 0
  %715 = vmatpush2.bf16.msra.mxu0 0
  %716 = vmatprep.subr.bf16.mxu0 0
  %717 = vmatpush2.bf16.msra.mxu0 0
  %718 = vmatprep.mubr.bf16.mxu0 0
  %719 = vmatmul.mubr.bf16.gmra.mxu0 %v383
  %v720 = vpop.f32.mrf.mxu0
  %v721 = vadd.f32 0.0, %v720
  %v722 = vpop.f32.mrf.mxu0
  %v723 = vpop.f32.mrf.mxu0
  %v724 = vadd.f32 0.0, %v723
  %v725 = vpop.f32.mrf.mxu0
  %726 = vmatprep.mubr.bf16.mxu0 0
  %727 = vmatmul.mubr.bf16.gmra.mxu0 %v386
  %v728 = vpop.f32.mrf.mxu0
  %v729 = vadd.f32 0.0, %v728
  %v730 = vpop.f32.mrf.mxu0
  %v731 = vpop.f32.mrf.mxu0
  %v732 = vadd.f32 0.0, %v731
  %v733 = vpop.f32.mrf.mxu0
  %734 = vmatprep.mubr.bf16.mxu0 0
  %735 = vmatmul.mubr.bf16.gmra.mxu0 %v389
  %v736 = vpop.f32.mrf.mxu0
  %v737 = vadd.f32 0.0, %v736
  %v738 = vpop.f32.mrf.mxu0
  %v739 = vpop.f32.mrf.mxu0
  %v740 = vadd.f32 0.0, %v739
  %v741 = vpop.f32.mrf.mxu0
  %742 = vmatprep.mubr.bf16.mxu0 0
  %743 = vmatmul.mubr.bf16.gmra.mxu0 %v392
  %v744 = vpop.f32.mrf.mxu0
  %v745 = vadd.f32 0.0, %v744
  %v746 = vpop.f32.mrf.mxu0
  %v747 = vpop.f32.mrf.mxu0
  %v748 = vadd.f32 0.0, %v747
  %v749 = vpop.f32.mrf.mxu0
  %750 = vdwg.mxu0
  %v759 = vunpack.c.l.b16 %v15
  %v760 = vunpack.c.l.b16 %v16
  %v761 = vunpack.c.l.b16 %v17
  %v762 = vunpack.c.l.b16 %v18
  %v763 = vunpack.c.l.b16 %v19
  %v764 = vunpack.c.l.b16 %v20
  %v765 = vunpack.c.l.b16 %v21
  %v766 = vunpack.c.l.b16 %v22
  %v767 = vpack.c.b16 %v760, %v759
  %v768 = vpack.c.b16 %v762, %v761
  %v769 = vpack.c.b16 %v764, %v763
  %v770 = vpack.c.b16 %v766, %v765
  %v808 = vsel %vm381, %v767, 0
  %v811 = vsel %vm381, %v768, 0
  %v814 = vsel %vm381, %v769, 0
  %v817 = vsel %vm381, %v770, 0
  %819 = vmatprep.subr.bf16.mxu0 0
  %820 = vmatpush1.bf16.msra.mxu0 0
  %821 = vmatprep.subr.bf16.mxu0 0
  %822 = vmatpush1.bf16.msra.mxu0 0
  %823 = vmatprep.subr.bf16.mxu0 0
  %824 = vmatpush1.bf16.msra.mxu0 0
  %825 = vmatprep.subr.bf16.mxu0 0
  %826 = vmatpush1.bf16.msra.mxu0 0
  %827 = vmatprep.subr.bf16.mxu0 %v232
  %828 = vmatpush1.bf16.msra.mxu0 %v231
  %829 = vmatprep.subr.bf16.mxu0 %v223
  %830 = vmatpush1.bf16.msra.mxu0 %v222
  %831 = vmatprep.subr.bf16.mxu0 %v214
  %832 = vmatpush1.bf16.msra.mxu0 %v213
  %833 = vmatprep.subr.bf16.mxu0 %v205
  %834 = vmatpush1.bf16.msra.mxu0 %v204
  %835 = vmatprep.subr.bf16.mxu0 0
  %836 = vmatpush2.bf16.msra.mxu0 0
  %837 = vmatprep.subr.bf16.mxu0 0
  %838 = vmatpush2.bf16.msra.mxu0 0
  %839 = vmatprep.subr.bf16.mxu0 0
  %840 = vmatpush2.bf16.msra.mxu0 0
  %841 = vmatprep.subr.bf16.mxu0 0
  %842 = vmatpush2.bf16.msra.mxu0 0
  %843 = vmatprep.subr.bf16.mxu0 0
  %844 = vmatpush2.bf16.msra.mxu0 0
  %845 = vmatprep.subr.bf16.mxu0 0
  %846 = vmatpush2.bf16.msra.mxu0 0
  %847 = vmatprep.subr.bf16.mxu0 0
  %848 = vmatpush2.bf16.msra.mxu0 0
  %849 = vmatprep.subr.bf16.mxu0 0
  %850 = vmatpush2.bf16.msra.mxu0 0
  %851 = vmatprep.mubr.bf16.mxu0 0
  %852 = vmatmul.mubr.bf16.gmra.mxu0 %v808
  %v853 = vpop.f32.mrf.mxu0
  %v854 = vadd.f32 %v429, %v853
  %v855 = vpop.f32.mrf.mxu0
  %v856 = vadd.f32 %v431, %v855
  %v857 = vpop.f32.mrf.mxu0
  %v858 = vadd.f32 %v433, %v857
  %v859 = vpop.f32.mrf.mxu0
  %v860 = vadd.f32 %v435, %v859
  %861 = vmatprep.mubr.bf16.mxu0 0
  %862 = vmatmul.mubr.bf16.gmra.mxu0 %v811
  %v863 = vpop.f32.mrf.mxu0
  %v864 = vadd.f32 %v439, %v863
  %v865 = vpop.f32.mrf.mxu0
  %v866 = vadd.f32 %v441, %v865
  %v867 = vpop.f32.mrf.mxu0
  %v868 = vadd.f32 %v443, %v867
  %v869 = vpop.f32.mrf.mxu0
  %v870 = vadd.f32 %v445, %v869
  %871 = vmatprep.mubr.bf16.mxu0 0
  %872 = vmatmul.mubr.bf16.gmra.mxu0 %v814
  %v873 = vpop.f32.mrf.mxu0
  %v874 = vadd.f32 %v449, %v873
  %v875 = vpop.f32.mrf.mxu0
  %v876 = vadd.f32 %v451, %v875
  %v877 = vpop.f32.mrf.mxu0
  %v878 = vadd.f32 %v453, %v877
  %v879 = vpop.f32.mrf.mxu0
  %v880 = vadd.f32 %v455, %v879
  %881 = vmatprep.mubr.bf16.mxu0 0
  %882 = vmatmul.mubr.bf16.gmra.mxu0 %v817
  %v883 = vpop.f32.mrf.mxu0
  %v884 = vadd.f32 %v459, %v883
  %v885 = vpop.f32.mrf.mxu0
  %v886 = vadd.f32 %v461, %v885
  %v887 = vpop.f32.mrf.mxu0
  %v888 = vadd.f32 %v463, %v887
  %v889 = vpop.f32.mrf.mxu0
  %v890 = vadd.f32 %v465, %v889
  %891 = vdwg.mxu0
  %892 = vmatprep.subr.bf16.mxu0 0
  %893 = vmatpush1.bf16.msra.mxu0 0
  %894 = vmatprep.subr.bf16.mxu0 0
  %895 = vmatpush1.bf16.msra.mxu0 0
  %896 = vmatprep.subr.bf16.mxu0 0
  %897 = vmatpush1.bf16.msra.mxu0 0
  %898 = vmatprep.subr.bf16.mxu0 0
  %899 = vmatpush1.bf16.msra.mxu0 0
  %900 = vmatprep.subr.bf16.mxu0 %v234
  %901 = vmatpush1.bf16.msra.mxu0 %v233
  %902 = vmatprep.subr.bf16.mxu0 %v225
  %903 = vmatpush1.bf16.msra.mxu0 %v224
  %904 = vmatprep.subr.bf16.mxu0 %v216
  %905 = vmatpush1.bf16.msra.mxu0 %v215
  %906 = vmatprep.subr.bf16.mxu0 %v207
  %907 = vmatpush1.bf16.msra.mxu0 %v206
  %908 = vmatprep.subr.bf16.mxu0 0
  %909 = vmatpush2.bf16.msra.mxu0 0
  %910 = vmatprep.subr.bf16.mxu0 0
  %911 = vmatpush2.bf16.msra.mxu0 0
  %912 = vmatprep.subr.bf16.mxu0 0
  %913 = vmatpush2.bf16.msra.mxu0 0
  %914 = vmatprep.subr.bf16.mxu0 0
  %915 = vmatpush2.bf16.msra.mxu0 0
  %916 = vmatprep.subr.bf16.mxu0 0
  %917 = vmatpush2.bf16.msra.mxu0 0
  %918 = vmatprep.subr.bf16.mxu0 0
  %919 = vmatpush2.bf16.msra.mxu0 0
  %920 = vmatprep.subr.bf16.mxu0 0
  %921 = vmatpush2.bf16.msra.mxu0 0
  %922 = vmatprep.subr.bf16.mxu0 0
  %923 = vmatpush2.bf16.msra.mxu0 0
  %924 = vmatprep.mubr.bf16.mxu0 0
  %925 = vmatmul.mubr.bf16.gmra.mxu0 %v808
  %v926 = vpop.f32.mrf.mxu0
  %v927 = vadd.f32 %v502, %v926
  %v928 = vpop.f32.mrf.mxu0
  %v929 = vadd.f32 %v504, %v928
  %v930 = vpop.f32.mrf.mxu0
  %v931 = vadd.f32 %v506, %v930
  %v932 = vpop.f32.mrf.mxu0
  %v933 = vadd.f32 %v508, %v932
  %934 = vmatprep.mubr.bf16.mxu0 0
  %935 = vmatmul.mubr.bf16.gmra.mxu0 %v811
  %v936 = vpop.f32.mrf.mxu0
  %v937 = vadd.f32 %v512, %v936
  %v938 = vpop.f32.mrf.mxu0
  %v939 = vadd.f32 %v514, %v938
  %v940 = vpop.f32.mrf.mxu0
  %v941 = vadd.f32 %v516, %v940
  %v942 = vpop.f32.mrf.mxu0
  %v943 = vadd.f32 %v518, %v942
  %944 = vmatprep.mubr.bf16.mxu0 0
  %945 = vmatmul.mubr.bf16.gmra.mxu0 %v814
  %v946 = vpop.f32.mrf.mxu0
  %v947 = vadd.f32 %v522, %v946
  %v948 = vpop.f32.mrf.mxu0
  %v949 = vadd.f32 %v524, %v948
  %v950 = vpop.f32.mrf.mxu0
  %v951 = vadd.f32 %v526, %v950
  %v952 = vpop.f32.mrf.mxu0
  %v953 = vadd.f32 %v528, %v952
  %954 = vmatprep.mubr.bf16.mxu0 0
  %955 = vmatmul.mubr.bf16.gmra.mxu0 %v817
  %v956 = vpop.f32.mrf.mxu0
  %v957 = vadd.f32 %v532, %v956
  %v958 = vpop.f32.mrf.mxu0
  %v959 = vadd.f32 %v534, %v958
  %v960 = vpop.f32.mrf.mxu0
  %v961 = vadd.f32 %v536, %v960
  %v962 = vpop.f32.mrf.mxu0
  %v963 = vadd.f32 %v538, %v962
  %964 = vdwg.mxu0
  %965 = vmatprep.subr.bf16.mxu0 0
  %966 = vmatpush1.bf16.msra.mxu0 0
  %967 = vmatprep.subr.bf16.mxu0 0
  %968 = vmatpush1.bf16.msra.mxu0 0
  %969 = vmatprep.subr.bf16.mxu0 0
  %970 = vmatpush1.bf16.msra.mxu0 0
  %971 = vmatprep.subr.bf16.mxu0 0
  %972 = vmatpush1.bf16.msra.mxu0 0
  %973 = vmatprep.subr.bf16.mxu0 %v236
  %974 = vmatpush1.bf16.msra.mxu0 %v235
  %975 = vmatprep.subr.bf16.mxu0 %v227
  %976 = vmatpush1.bf16.msra.mxu0 %v226
  %977 = vmatprep.subr.bf16.mxu0 %v218
  %978 = vmatpush1.bf16.msra.mxu0 %v217
  %979 = vmatprep.subr.bf16.mxu0 %v209
  %980 = vmatpush1.bf16.msra.mxu0 %v208
  %981 = vmatprep.subr.bf16.mxu0 0
  %982 = vmatpush2.bf16.msra.mxu0 0
  %983 = vmatprep.subr.bf16.mxu0 0
  %984 = vmatpush2.bf16.msra.mxu0 0
  %985 = vmatprep.subr.bf16.mxu0 0
  %986 = vmatpush2.bf16.msra.mxu0 0
  %987 = vmatprep.subr.bf16.mxu0 0
  %988 = vmatpush2.bf16.msra.mxu0 0
  %989 = vmatprep.subr.bf16.mxu0 0
  %990 = vmatpush2.bf16.msra.mxu0 0
  %991 = vmatprep.subr.bf16.mxu0 0
  %992 = vmatpush2.bf16.msra.mxu0 0
  %993 = vmatprep.subr.bf16.mxu0 0
  %994 = vmatpush2.bf16.msra.mxu0 0
  %995 = vmatprep.subr.bf16.mxu0 0
  %996 = vmatpush2.bf16.msra.mxu0 0
  %997 = vmatprep.mubr.bf16.mxu0 0
  %998 = vmatmul.mubr.bf16.gmra.mxu0 %v808
  %v999 = vpop.f32.mrf.mxu0
  %v1000 = vadd.f32 %v575, %v999
  %v1001 = vpop.f32.mrf.mxu0
  %v1002 = vadd.f32 %v577, %v1001
  %v1003 = vpop.f32.mrf.mxu0
  %v1004 = vadd.f32 %v579, %v1003
  %v1005 = vpop.f32.mrf.mxu0
  %v1006 = vadd.f32 %v581, %v1005
  %1007 = vmatprep.mubr.bf16.mxu0 0
  %1008 = vmatmul.mubr.bf16.gmra.mxu0 %v811
  %v1009 = vpop.f32.mrf.mxu0
  %v1010 = vadd.f32 %v585, %v1009
  %v1011 = vpop.f32.mrf.mxu0
  %v1012 = vadd.f32 %v587, %v1011
  %v1013 = vpop.f32.mrf.mxu0
  %v1014 = vadd.f32 %v589, %v1013
  %v1015 = vpop.f32.mrf.mxu0
  %v1016 = vadd.f32 %v591, %v1015
  %1017 = vmatprep.mubr.bf16.mxu0 0
  %1018 = vmatmul.mubr.bf16.gmra.mxu0 %v814
  %v1019 = vpop.f32.mrf.mxu0
  %v1020 = vadd.f32 %v595, %v1019
  %v1021 = vpop.f32.mrf.mxu0
  %v1022 = vadd.f32 %v597, %v1021
  %v1023 = vpop.f32.mrf.mxu0
  %v1024 = vadd.f32 %v599, %v1023
  %v1025 = vpop.f32.mrf.mxu0
  %v1026 = vadd.f32 %v601, %v1025
  %1027 = vmatprep.mubr.bf16.mxu0 0
  %1028 = vmatmul.mubr.bf16.gmra.mxu0 %v817
  %v1029 = vpop.f32.mrf.mxu0
  %v1030 = vadd.f32 %v605, %v1029
  %v1031 = vpop.f32.mrf.mxu0
  %v1032 = vadd.f32 %v607, %v1031
  %v1033 = vpop.f32.mrf.mxu0
  %v1034 = vadd.f32 %v609, %v1033
  %v1035 = vpop.f32.mrf.mxu0
  %v1036 = vadd.f32 %v611, %v1035
  %1037 = vdwg.mxu0
  %1038 = vmatprep.subr.bf16.mxu0 0
  %1039 = vmatpush1.bf16.msra.mxu0 0
  %1040 = vmatprep.subr.bf16.mxu0 0
  %1041 = vmatpush1.bf16.msra.mxu0 0
  %1042 = vmatprep.subr.bf16.mxu0 0
  %1043 = vmatpush1.bf16.msra.mxu0 0
  %1044 = vmatprep.subr.bf16.mxu0 0
  %1045 = vmatpush1.bf16.msra.mxu0 0
  %1046 = vmatprep.subr.bf16.mxu0 %v238
  %1047 = vmatpush1.bf16.msra.mxu0 %v237
  %1048 = vmatprep.subr.bf16.mxu0 %v229
  %1049 = vmatpush1.bf16.msra.mxu0 %v228
  %1050 = vmatprep.subr.bf16.mxu0 %v220
  %1051 = vmatpush1.bf16.msra.mxu0 %v219
  %1052 = vmatprep.subr.bf16.mxu0 %v211
  %1053 = vmatpush1.bf16.msra.mxu0 %v210
  %1054 = vmatprep.subr.bf16.mxu0 0
  %1055 = vmatpush2.bf16.msra.mxu0 0
  %1056 = vmatprep.subr.bf16.mxu0 0
  %1057 = vmatpush2.bf16.msra.mxu0 0
  %1058 = vmatprep.subr.bf16.mxu0 0
  %1059 = vmatpush2.bf16.msra.mxu0 0
  %1060 = vmatprep.subr.bf16.mxu0 0
  %1061 = vmatpush2.bf16.msra.mxu0 0
  %1062 = vmatprep.subr.bf16.mxu0 0
  %1063 = vmatpush2.bf16.msra.mxu0 0
  %1064 = vmatprep.subr.bf16.mxu0 0
  %1065 = vmatpush2.bf16.msra.mxu0 0
  %1066 = vmatprep.subr.bf16.mxu0 0
  %1067 = vmatpush2.bf16.msra.mxu0 0
  %1068 = vmatprep.subr.bf16.mxu0 0
  %1069 = vmatpush2.bf16.msra.mxu0 0
  %1070 = vmatprep.mubr.bf16.mxu0 0
  %1071 = vmatmul.mubr.bf16.gmra.mxu0 %v808
  %v1072 = vpop.f32.mrf.mxu0
  %v1073 = vadd.f32 %v648, %v1072
  %v1074 = vpop.f32.mrf.mxu0
  %v1075 = vadd.f32 %v650, %v1074
  %v1076 = vpop.f32.mrf.mxu0
  %v1077 = vadd.f32 %v652, %v1076
  %v1078 = vpop.f32.mrf.mxu0
  %v1079 = vadd.f32 %v654, %v1078
  %1080 = vmatprep.mubr.bf16.mxu0 0
  %1081 = vmatmul.mubr.bf16.gmra.mxu0 %v811
  %v1082 = vpop.f32.mrf.mxu0
  %v1083 = vadd.f32 %v658, %v1082
  %v1084 = vpop.f32.mrf.mxu0
  %v1085 = vadd.f32 %v660, %v1084
  %v1086 = vpop.f32.mrf.mxu0
  %v1087 = vadd.f32 %v662, %v1086
  %v1088 = vpop.f32.mrf.mxu0
  %v1089 = vadd.f32 %v664, %v1088
  %1090 = vmatprep.mubr.bf16.mxu0 0
  %1091 = vmatmul.mubr.bf16.gmra.mxu0 %v814
  %v1092 = vpop.f32.mrf.mxu0
  %v1093 = vadd.f32 %v668, %v1092
  %v1094 = vpop.f32.mrf.mxu0
  %v1095 = vadd.f32 %v670, %v1094
  %v1096 = vpop.f32.mrf.mxu0
  %v1097 = vadd.f32 %v672, %v1096
  %v1098 = vpop.f32.mrf.mxu0
  %v1099 = vadd.f32 %v674, %v1098
  %1100 = vmatprep.mubr.bf16.mxu0 0
  %1101 = vmatmul.mubr.bf16.gmra.mxu0 %v817
  %v1102 = vpop.f32.mrf.mxu0
  %v1103 = vadd.f32 %v678, %v1102
  %v1104 = vpop.f32.mrf.mxu0
  %v1105 = vadd.f32 %v680, %v1104
  %v1106 = vpop.f32.mrf.mxu0
  %v1107 = vadd.f32 %v682, %v1106
  %v1108 = vpop.f32.mrf.mxu0
  %v1109 = vadd.f32 %v684, %v1108
  %1110 = vdwg.mxu0
  %1111 = vmatprep.subr.bf16.mxu0 0
  %1112 = vmatpush1.bf16.msra.mxu0 0
  %1113 = vmatprep.subr.bf16.mxu0 0
  %1114 = vmatpush1.bf16.msra.mxu0 0
  %1115 = vmatprep.subr.bf16.mxu0 0
  %1116 = vmatpush1.bf16.msra.mxu0 0
  %1117 = vmatprep.subr.bf16.mxu0 0
  %1118 = vmatpush1.bf16.msra.mxu0 0
  %1119 = vmatprep.subr.bf16.mxu0 0
  %1120 = vmatpush1.bf16.msra.mxu0 %v239
  %1121 = vmatprep.subr.bf16.mxu0 0
  %1122 = vmatpush1.bf16.msra.mxu0 %v230
  %1123 = vmatprep.subr.bf16.mxu0 0
  %1124 = vmatpush1.bf16.msra.mxu0 %v221
  %1125 = vmatprep.subr.bf16.mxu0 0
  %1126 = vmatpush1.bf16.msra.mxu0 %v212
  %1127 = vmatprep.subr.bf16.mxu0 0
  %1128 = vmatpush2.bf16.msra.mxu0 0
  %1129 = vmatprep.subr.bf16.mxu0 0
  %1130 = vmatpush2.bf16.msra.mxu0 0
  %1131 = vmatprep.subr.bf16.mxu0 0
  %1132 = vmatpush2.bf16.msra.mxu0 0
  %1133 = vmatprep.subr.bf16.mxu0 0
  %1134 = vmatpush2.bf16.msra.mxu0 0
  %1135 = vmatprep.subr.bf16.mxu0 0
  %1136 = vmatpush2.bf16.msra.mxu0 0
  %1137 = vmatprep.subr.bf16.mxu0 0
  %1138 = vmatpush2.bf16.msra.mxu0 0
  %1139 = vmatprep.subr.bf16.mxu0 0
  %1140 = vmatpush2.bf16.msra.mxu0 0
  %1141 = vmatprep.subr.bf16.mxu0 0
  %1142 = vmatpush2.bf16.msra.mxu0 0
  %1143 = vmatprep.mubr.bf16.mxu0 0
  %1144 = vmatmul.mubr.bf16.gmra.mxu0 %v808
  %v1145 = vpop.f32.mrf.mxu0
  %v1146 = vadd.f32 %v721, %v1145
  %v1147 = vpop.f32.mrf.mxu0
  %v1148 = vpop.f32.mrf.mxu0
  %v1149 = vadd.f32 %v724, %v1148
  %v1150 = vpop.f32.mrf.mxu0
  %1151 = vmatprep.mubr.bf16.mxu0 0
  %1152 = vmatmul.mubr.bf16.gmra.mxu0 %v811
  %v1153 = vpop.f32.mrf.mxu0
  %v1154 = vadd.f32 %v729, %v1153
  %v1155 = vpop.f32.mrf.mxu0
  %v1156 = vpop.f32.mrf.mxu0
  %v1157 = vadd.f32 %v732, %v1156
  %v1158 = vpop.f32.mrf.mxu0
  %1159 = vmatprep.mubr.bf16.mxu0 0
  %1160 = vmatmul.mubr.bf16.gmra.mxu0 %v814
  %v1161 = vpop.f32.mrf.mxu0
  %v1162 = vadd.f32 %v737, %v1161
  %v1163 = vpop.f32.mrf.mxu0
  %v1164 = vpop.f32.mrf.mxu0
  %v1165 = vadd.f32 %v740, %v1164
  %v1166 = vpop.f32.mrf.mxu0
  %1167 = vmatprep.mubr.bf16.mxu0 0
  %1168 = vmatmul.mubr.bf16.gmra.mxu0 %v817
  %v1169 = vpop.f32.mrf.mxu0
  %v1170 = vadd.f32 %v745, %v1169
  %v1171 = vpop.f32.mrf.mxu0
  %v1172 = vpop.f32.mrf.mxu0
  %v1173 = vadd.f32 %v748, %v1172
  %v1174 = vpop.f32.mrf.mxu0
  %1175 = vdwg.mxu0
  %s1176 = scalar_lea.vmem %s1, 64
  %v1177 = vld [vmem:[%s1176] sm:$0xf]
  %v1178 = vld [vmem:[%s1176 + $0x4] sm:$0xf]
  %v1179 = vld [vmem:[%s1176 + $0x8] sm:$0xf]
  %v1180 = vld [vmem:[%s1176 + $0xc] sm:$0xf]
  %v1181 = vld [vmem:[%s1176 + $0x10] sm:$0xf]
  %v1182 = vld [vmem:[%s1176 + $0x14] sm:$0xf]
  %v1183 = vld [vmem:[%s1176 + $0x18] sm:$0xf]
  %v1184 = vld [vmem:[%s1176 + $0x1c] sm:$0xf]
  %v1193 = vunpack.c.l.b16 %v1177
  %v1194 = vunpack.c.l.b16 %v1178
  %v1195 = vunpack.c.l.b16 %v1179
  %v1196 = vunpack.c.l.b16 %v1180
  %v1197 = vunpack.c.l.b16 %v1181
  %v1198 = vunpack.c.l.b16 %v1182
  %v1199 = vunpack.c.l.b16 %v1183
  %v1200 = vunpack.c.l.b16 %v1184
  %v1201 = vpack.c.b16 %v1194, %v1193
  %v1202 = vpack.c.b16 %v1196, %v1195
  %v1203 = vpack.c.b16 %v1198, %v1197
  %v1204 = vpack.c.b16 %v1200, %v1199
  %1205 = vrot.lane.b32.xlu0 %v204, 95
  %v1206 = vpop.permute.xlu0 %1205
  %1207 = vrot.lane.b32.xlu0 %v205, 95
  %v1208 = vpop.permute.xlu0 %1207
  %1209 = vrot.lane.b32.xlu0 %v206, 95
  %v1210 = vpop.permute.xlu0 %1209
  %1211 = vrot.lane.b32.xlu0 %v207, 95
  %v1212 = vpop.permute.xlu0 %1211
  %1213 = vrot.lane.b32.xlu0 %v208, 95
  %v1214 = vpop.permute.xlu0 %1213
  %1215 = vrot.lane.b32.xlu0 %v209, 95
  %v1216 = vpop.permute.xlu0 %1215
  %1217 = vrot.lane.b32.xlu0 %v210, 95
  %v1218 = vpop.permute.xlu0 %1217
  %1219 = vrot.lane.b32.xlu0 %v211, 95
  %v1220 = vpop.permute.xlu0 %1219
  %1221 = vrot.lane.b32.xlu0 %v212, 95
  %v1222 = vpop.permute.xlu0 %1221
  %1223 = vrot.lane.b32.xlu0 %v213, 95
  %v1224 = vpop.permute.xlu0 %1223
  %1225 = vrot.lane.b32.xlu0 %v214, 95
  %v1226 = vpop.permute.xlu0 %1225
  %1227 = vrot.lane.b32.xlu0 %v215, 95
  %v1228 = vpop.permute.xlu0 %1227
  %1229 = vrot.lane.b32.xlu0 %v216, 95
  %v1230 = vpop.permute.xlu0 %1229
  %1231 = vrot.lane.b32.xlu0 %v217, 95
  %v1232 = vpop.permute.xlu0 %1231
  %1233 = vrot.lane.b32.xlu0 %v218, 95
  %v1234 = vpop.permute.xlu0 %1233
  %1235 = vrot.lane.b32.xlu0 %v219, 95
  %v1236 = vpop.permute.xlu0 %1235
  %1237 = vrot.lane.b32.xlu0 %v220, 95
  %v1238 = vpop.permute.xlu0 %1237
  %1239 = vrot.lane.b32.xlu0 %v221, 95
  %v1240 = vpop.permute.xlu0 %1239
  %1241 = vrot.lane.b32.xlu0 %v222, 95
  %v1242 = vpop.permute.xlu0 %1241
  %1243 = vrot.lane.b32.xlu0 %v223, 95
  %v1244 = vpop.permute.xlu0 %1243
  %1245 = vrot.lane.b32.xlu0 %v224, 95
  %v1246 = vpop.permute.xlu0 %1245
  %1247 = vrot.lane.b32.xlu0 %v225, 95
  %v1248 = vpop.permute.xlu0 %1247
  %1249 = vrot.lane.b32.xlu0 %v226, 95
  %v1250 = vpop.permute.xlu0 %1249
  %1251 = vrot.lane.b32.xlu0 %v227, 95
  %v1252 = vpop.permute.xlu0 %1251
  %1253 = vrot.lane.b32.xlu0 %v228, 95
  %v1254 = vpop.permute.xlu0 %1253
  %1255 = vrot.lane.b32.xlu0 %v229, 95
  %v1256 = vpop.permute.xlu0 %1255
  %1257 = vrot.lane.b32.xlu0 %v230, 95
  %v1258 = vpop.permute.xlu0 %1257
  %1259 = vrot.lane.b32.xlu0 %v231, 95
  %v1260 = vpop.permute.xlu0 %1259
  %1261 = vrot.lane.b32.xlu0 %v232, 95
  %v1262 = vpop.permute.xlu0 %1261
  %1263 = vrot.lane.b32.xlu0 %v233, 95
  %v1264 = vpop.permute.xlu0 %1263
  %1265 = vrot.lane.b32.xlu0 %v234, 95
  %v1266 = vpop.permute.xlu0 %1265
  %1267 = vrot.lane.b32.xlu0 %v235, 95
  %v1268 = vpop.permute.xlu0 %1267
  %1269 = vrot.lane.b32.xlu0 %v236, 95
  %v1270 = vpop.permute.xlu0 %1269
  %1271 = vrot.lane.b32.xlu0 %v237, 95
  %v1272 = vpop.permute.xlu0 %1271
  %1273 = vrot.lane.b32.xlu0 %v238, 95
  %v1274 = vpop.permute.xlu0 %1273
  %1275 = vrot.lane.b32.xlu0 %v239, 95
  %v1276 = vpop.permute.xlu0 %1275
  %vm1277 = vcmask 777216
  %v1278 = vsel %vm1277, %v1206, %v1208
  %v1279 = vsel %vm1277, %v1208, %v1210
  %v1280 = vsel %vm1277, %v1210, %v1212
  %v1281 = vsel %vm1277, %v1212, %v1214
  %v1282 = vsel %vm1277, %v1214, %v1216
  %v1283 = vsel %vm1277, %v1216, %v1218
  %v1284 = vsel %vm1277, %v1218, %v1220
  %v1285 = vsel %vm1277, %v1220, %v1222
  %v1286 = vsel %vm1277, %v1224, %v1226
  %v1287 = vsel %vm1277, %v1226, %v1228
  %v1288 = vsel %vm1277, %v1228, %v1230
  %v1289 = vsel %vm1277, %v1230, %v1232
  %v1290 = vsel %vm1277, %v1232, %v1234
  %v1291 = vsel %vm1277, %v1234, %v1236
  %v1292 = vsel %vm1277, %v1236, %v1238
  %v1293 = vsel %vm1277, %v1238, %v1240
  %v1294 = vsel %vm1277, %v1242, %v1244
  %v1295 = vsel %vm1277, %v1244, %v1246
  %v1296 = vsel %vm1277, %v1246, %v1248
  %v1297 = vsel %vm1277, %v1248, %v1250
  %v1298 = vsel %vm1277, %v1250, %v1252
  %v1299 = vsel %vm1277, %v1252, %v1254
  %v1300 = vsel %vm1277, %v1254, %v1256
  %v1301 = vsel %vm1277, %v1256, %v1258
  %v1302 = vsel %vm1277, %v1260, %v1262
  %v1303 = vsel %vm1277, %v1262, %v1264
  %v1304 = vsel %vm1277, %v1264, %v1266
  %v1305 = vsel %vm1277, %v1266, %v1268
  %v1306 = vsel %vm1277, %v1268, %v1270
  %v1307 = vsel %vm1277, %v1270, %v1272
  %v1308 = vsel %vm1277, %v1272, %v1274
  %v1309 = vsel %vm1277, %v1274, %v1276
  %v1347 = vsel %vm381, %v1201, 0
  %v1350 = vsel %vm381, %v1202, 0
  %v1353 = vsel %vm381, %v1203, 0
  %v1356 = vsel %vm381, %v1204, 0
  %1358 = vmatprep.subr.bf16.mxu0 0
  %1359 = vmatpush1.bf16.msra.mxu0 0
  %1360 = vmatprep.subr.bf16.mxu0 0
  %1361 = vmatpush1.bf16.msra.mxu0 0
  %1362 = vmatprep.subr.bf16.mxu0 0
  %1363 = vmatpush1.bf16.msra.mxu0 0
  %1364 = vmatprep.subr.bf16.mxu0 0
  %1365 = vmatpush1.bf16.msra.mxu0 0
  %1366 = vmatprep.subr.bf16.mxu0 %v1303
  %1367 = vmatpush1.bf16.msra.mxu0 %v1302
  %1368 = vmatprep.subr.bf16.mxu0 %v1295
  %1369 = vmatpush1.bf16.msra.mxu0 %v1294
  %1370 = vmatprep.subr.bf16.mxu0 %v1287
  %1371 = vmatpush1.bf16.msra.mxu0 %v1286
  %1372 = vmatprep.subr.bf16.mxu0 %v1279
  %1373 = vmatpush1.bf16.msra.mxu0 %v1278
  %1374 = vmatprep.subr.bf16.mxu0 0
  %1375 = vmatpush2.bf16.msra.mxu0 0
  %1376 = vmatprep.subr.bf16.mxu0 0
  %1377 = vmatpush2.bf16.msra.mxu0 0
  %1378 = vmatprep.subr.bf16.mxu0 0
  %1379 = vmatpush2.bf16.msra.mxu0 0
  %1380 = vmatprep.subr.bf16.mxu0 0
  %1381 = vmatpush2.bf16.msra.mxu0 0
  %1382 = vmatprep.subr.bf16.mxu0 0
  %1383 = vmatpush2.bf16.msra.mxu0 0
  %1384 = vmatprep.subr.bf16.mxu0 0
  %1385 = vmatpush2.bf16.msra.mxu0 0
  %1386 = vmatprep.subr.bf16.mxu0 0
  %1387 = vmatpush2.bf16.msra.mxu0 0
  %1388 = vmatprep.subr.bf16.mxu0 0
  %1389 = vmatpush2.bf16.msra.mxu0 0
  %1390 = vmatprep.mubr.bf16.mxu0 0
  %1391 = vmatmul.mubr.bf16.gmra.mxu0 %v1347
  %v1392 = vpop.f32.mrf.mxu0
  %v1393 = vadd.f32 0.0, %v1392
  %v1394 = vpop.f32.mrf.mxu0
  %v1395 = vadd.f32 0.0, %v1394
  %v1396 = vpop.f32.mrf.mxu0
  %v1397 = vadd.f32 0.0, %v1396
  %v1398 = vpop.f32.mrf.mxu0
  %v1399 = vadd.f32 0.0, %v1398
  %1400 = vmatprep.mubr.bf16.mxu0 0
  %1401 = vmatmul.mubr.bf16.gmra.mxu0 %v1350
  %v1402 = vpop.f32.mrf.mxu0
  %v1403 = vadd.f32 0.0, %v1402
  %v1404 = vpop.f32.mrf.mxu0
  %v1405 = vadd.f32 0.0, %v1404
  %v1406 = vpop.f32.mrf.mxu0
  %v1407 = vadd.f32 0.0, %v1406
  %v1408 = vpop.f32.mrf.mxu0
  %v1409 = vadd.f32 0.0, %v1408
  %1410 = vmatprep.mubr.bf16.mxu0 0
  %1411 = vmatmul.mubr.bf16.gmra.mxu0 %v1353
  %v1412 = vpop.f32.mrf.mxu0
  %v1413 = vadd.f32 0.0, %v1412
  %v1414 = vpop.f32.mrf.mxu0
  %v1415 = vadd.f32 0.0, %v1414
  %v1416 = vpop.f32.mrf.mxu0
  %v1417 = vadd.f32 0.0, %v1416
  %v1418 = vpop.f32.mrf.mxu0
  %v1419 = vadd.f32 0.0, %v1418
  %1420 = vmatprep.mubr.bf16.mxu0 0
  %1421 = vmatmul.mubr.bf16.gmra.mxu0 %v1356
  %v1422 = vpop.f32.mrf.mxu0
  %v1423 = vadd.f32 0.0, %v1422
  %v1424 = vpop.f32.mrf.mxu0
  %v1425 = vadd.f32 0.0, %v1424
  %v1426 = vpop.f32.mrf.mxu0
  %v1427 = vadd.f32 0.0, %v1426
  %v1428 = vpop.f32.mrf.mxu0
  %v1429 = vadd.f32 0.0, %v1428
  %1430 = vdwg.mxu0
  %1431 = vmatprep.subr.bf16.mxu0 0
  %1432 = vmatpush1.bf16.msra.mxu0 0
  %1433 = vmatprep.subr.bf16.mxu0 0
  %1434 = vmatpush1.bf16.msra.mxu0 0
  %1435 = vmatprep.subr.bf16.mxu0 0
  %1436 = vmatpush1.bf16.msra.mxu0 0
  %1437 = vmatprep.subr.bf16.mxu0 0
  %1438 = vmatpush1.bf16.msra.mxu0 0
  %1439 = vmatprep.subr.bf16.mxu0 %v1305
  %1440 = vmatpush1.bf16.msra.mxu0 %v1304
  %1441 = vmatprep.subr.bf16.mxu0 %v1297
  %1442 = vmatpush1.bf16.msra.mxu0 %v1296
  %1443 = vmatprep.subr.bf16.mxu0 %v1289
  %1444 = vmatpush1.bf16.msra.mxu0 %v1288
  %1445 = vmatprep.subr.bf16.mxu0 %v1281
  %1446 = vmatpush1.bf16.msra.mxu0 %v1280
  %1447 = vmatprep.subr.bf16.mxu0 0
  %1448 = vmatpush2.bf16.msra.mxu0 0
  %1449 = vmatprep.subr.bf16.mxu0 0
  %1450 = vmatpush2.bf16.msra.mxu0 0
  %1451 = vmatprep.subr.bf16.mxu0 0
  %1452 = vmatpush2.bf16.msra.mxu0 0
  %1453 = vmatprep.subr.bf16.mxu0 0
  %1454 = vmatpush2.bf16.msra.mxu0 0
  %1455 = vmatprep.subr.bf16.mxu0 0
  %1456 = vmatpush2.bf16.msra.mxu0 0
  %1457 = vmatprep.subr.bf16.mxu0 0
  %1458 = vmatpush2.bf16.msra.mxu0 0
  %1459 = vmatprep.subr.bf16.mxu0 0
  %1460 = vmatpush2.bf16.msra.mxu0 0
  %1461 = vmatprep.subr.bf16.mxu0 0
  %1462 = vmatpush2.bf16.msra.mxu0 0
  %1463 = vmatprep.mubr.bf16.mxu0 0
  %1464 = vmatmul.mubr.bf16.gmra.mxu0 %v1347
  %v1465 = vpop.f32.mrf.mxu0
  %v1466 = vadd.f32 0.0, %v1465
  %v1467 = vpop.f32.mrf.mxu0
  %v1468 = vadd.f32 0.0, %v1467
  %v1469 = vpop.f32.mrf.mxu0
  %v1470 = vadd.f32 0.0, %v1469
  %v1471 = vpop.f32.mrf.mxu0
  %v1472 = vadd.f32 0.0, %v1471
  %1473 = vmatprep.mubr.bf16.mxu0 0
  %1474 = vmatmul.mubr.bf16.gmra.mxu0 %v1350
  %v1475 = vpop.f32.mrf.mxu0
  %v1476 = vadd.f32 0.0, %v1475
  %v1477 = vpop.f32.mrf.mxu0
  %v1478 = vadd.f32 0.0, %v1477
  %v1479 = vpop.f32.mrf.mxu0
  %v1480 = vadd.f32 0.0, %v1479
  %v1481 = vpop.f32.mrf.mxu0
  %v1482 = vadd.f32 0.0, %v1481
  %1483 = vmatprep.mubr.bf16.mxu0 0
  %1484 = vmatmul.mubr.bf16.gmra.mxu0 %v1353
  %v1485 = vpop.f32.mrf.mxu0
  %v1486 = vadd.f32 0.0, %v1485
  %v1487 = vpop.f32.mrf.mxu0
  %v1488 = vadd.f32 0.0, %v1487
  %v1489 = vpop.f32.mrf.mxu0
  %v1490 = vadd.f32 0.0, %v1489
  %v1491 = vpop.f32.mrf.mxu0
  %v1492 = vadd.f32 0.0, %v1491
  %1493 = vmatprep.mubr.bf16.mxu0 0
  %1494 = vmatmul.mubr.bf16.gmra.mxu0 %v1356
  %v1495 = vpop.f32.mrf.mxu0
  %v1496 = vadd.f32 0.0, %v1495
  %v1497 = vpop.f32.mrf.mxu0
  %v1498 = vadd.f32 0.0, %v1497
  %v1499 = vpop.f32.mrf.mxu0
  %v1500 = vadd.f32 0.0, %v1499
  %v1501 = vpop.f32.mrf.mxu0
  %v1502 = vadd.f32 0.0, %v1501
  %1503 = vdwg.mxu0
  %1504 = vmatprep.subr.bf16.mxu0 0
  %1505 = vmatpush1.bf16.msra.mxu0 0
  %1506 = vmatprep.subr.bf16.mxu0 0
  %1507 = vmatpush1.bf16.msra.mxu0 0
  %1508 = vmatprep.subr.bf16.mxu0 0
  %1509 = vmatpush1.bf16.msra.mxu0 0
  %1510 = vmatprep.subr.bf16.mxu0 0
  %1511 = vmatpush1.bf16.msra.mxu0 0
  %1512 = vmatprep.subr.bf16.mxu0 %v1307
  %1513 = vmatpush1.bf16.msra.mxu0 %v1306
  %1514 = vmatprep.subr.bf16.mxu0 %v1299
  %1515 = vmatpush1.bf16.msra.mxu0 %v1298
  %1516 = vmatprep.subr.bf16.mxu0 %v1291
  %1517 = vmatpush1.bf16.msra.mxu0 %v1290
  %1518 = vmatprep.subr.bf16.mxu0 %v1283
  %1519 = vmatpush1.bf16.msra.mxu0 %v1282
  %1520 = vmatprep.subr.bf16.mxu0 0
  %1521 = vmatpush2.bf16.msra.mxu0 0
  %1522 = vmatprep.subr.bf16.mxu0 0
  %1523 = vmatpush2.bf16.msra.mxu0 0
  %1524 = vmatprep.subr.bf16.mxu0 0
  %1525 = vmatpush2.bf16.msra.mxu0 0
  %1526 = vmatprep.subr.bf16.mxu0 0
  %1527 = vmatpush2.bf16.msra.mxu0 0
  %1528 = vmatprep.subr.bf16.mxu0 0
  %1529 = vmatpush2.bf16.msra.mxu0 0
  %1530 = vmatprep.subr.bf16.mxu0 0
  %1531 = vmatpush2.bf16.msra.mxu0 0
  %1532 = vmatprep.subr.bf16.mxu0 0
  %1533 = vmatpush2.bf16.msra.mxu0 0
  %1534 = vmatprep.subr.bf16.mxu0 0
  %1535 = vmatpush2.bf16.msra.mxu0 0
  %1536 = vmatprep.mubr.bf16.mxu0 0
  %1537 = vmatmul.mubr.bf16.gmra.mxu0 %v1347
  %v1538 = vpop.f32.mrf.mxu0
  %v1539 = vadd.f32 0.0, %v1538
  %v1540 = vpop.f32.mrf.mxu0
  %v1541 = vadd.f32 0.0, %v1540
  %v1542 = vpop.f32.mrf.mxu0
  %v1543 = vadd.f32 0.0, %v1542
  %v1544 = vpop.f32.mrf.mxu0
  %v1545 = vadd.f32 0.0, %v1544
  %1546 = vmatprep.mubr.bf16.mxu0 0
  %1547 = vmatmul.mubr.bf16.gmra.mxu0 %v1350
  %v1548 = vpop.f32.mrf.mxu0
  %v1549 = vadd.f32 0.0, %v1548
  %v1550 = vpop.f32.mrf.mxu0
  %v1551 = vadd.f32 0.0, %v1550
  %v1552 = vpop.f32.mrf.mxu0
  %v1553 = vadd.f32 0.0, %v1552
  %v1554 = vpop.f32.mrf.mxu0
  %v1555 = vadd.f32 0.0, %v1554
  %1556 = vmatprep.mubr.bf16.mxu0 0
  %1557 = vmatmul.mubr.bf16.gmra.mxu0 %v1353
  %v1558 = vpop.f32.mrf.mxu0
  %v1559 = vadd.f32 0.0, %v1558
  %v1560 = vpop.f32.mrf.mxu0
  %v1561 = vadd.f32 0.0, %v1560
  %v1562 = vpop.f32.mrf.mxu0
  %v1563 = vadd.f32 0.0, %v1562
  %v1564 = vpop.f32.mrf.mxu0
  %v1565 = vadd.f32 0.0, %v1564
  %1566 = vmatprep.mubr.bf16.mxu0 0
  %1567 = vmatmul.mubr.bf16.gmra.mxu0 %v1356
  %v1568 = vpop.f32.mrf.mxu0
  %v1569 = vadd.f32 0.0, %v1568
  %v1570 = vpop.f32.mrf.mxu0
  %v1571 = vadd.f32 0.0, %v1570
  %v1572 = vpop.f32.mrf.mxu0
  %v1573 = vadd.f32 0.0, %v1572
  %v1574 = vpop.f32.mrf.mxu0
  %v1575 = vadd.f32 0.0, %v1574
  %1576 = vdwg.mxu0
  %1577 = vmatprep.subr.bf16.mxu0 0
  %1578 = vmatpush1.bf16.msra.mxu0 0
  %1579 = vmatprep.subr.bf16.mxu0 0
  %1580 = vmatpush1.bf16.msra.mxu0 0
  %1581 = vmatprep.subr.bf16.mxu0 0
  %1582 = vmatpush1.bf16.msra.mxu0 0
  %1583 = vmatprep.subr.bf16.mxu0 0
  %1584 = vmatpush1.bf16.msra.mxu0 0
  %1585 = vmatprep.subr.bf16.mxu0 %v1309
  %1586 = vmatpush1.bf16.msra.mxu0 %v1308
  %1587 = vmatprep.subr.bf16.mxu0 %v1301
  %1588 = vmatpush1.bf16.msra.mxu0 %v1300
  %1589 = vmatprep.subr.bf16.mxu0 %v1293
  %1590 = vmatpush1.bf16.msra.mxu0 %v1292
  %1591 = vmatprep.subr.bf16.mxu0 %v1285
  %1592 = vmatpush1.bf16.msra.mxu0 %v1284
  %1593 = vmatprep.subr.bf16.mxu0 0
  %1594 = vmatpush2.bf16.msra.mxu0 0
  %1595 = vmatprep.subr.bf16.mxu0 0
  %1596 = vmatpush2.bf16.msra.mxu0 0
  %1597 = vmatprep.subr.bf16.mxu0 0
  %1598 = vmatpush2.bf16.msra.mxu0 0
  %1599 = vmatprep.subr.bf16.mxu0 0
  %1600 = vmatpush2.bf16.msra.mxu0 0
  %1601 = vmatprep.subr.bf16.mxu0 0
  %1602 = vmatpush2.bf16.msra.mxu0 0
  %1603 = vmatprep.subr.bf16.mxu0 0
  %1604 = vmatpush2.bf16.msra.mxu0 0
  %1605 = vmatprep.subr.bf16.mxu0 0
  %1606 = vmatpush2.bf16.msra.mxu0 0
  %1607 = vmatprep.subr.bf16.mxu0 0
  %1608 = vmatpush2.bf16.msra.mxu0 0
  %1609 = vmatprep.mubr.bf16.mxu0 0
  %1610 = vmatmul.mubr.bf16.gmra.mxu0 %v1347
  %v1611 = vpop.f32.mrf.mxu0
  %v1612 = vadd.f32 0.0, %v1611
  %v1613 = vpop.f32.mrf.mxu0
  %v1614 = vadd.f32 0.0, %v1613
  %v1615 = vpop.f32.mrf.mxu0
  %v1616 = vadd.f32 0.0, %v1615
  %v1617 = vpop.f32.mrf.mxu0
  %v1618 = vadd.f32 0.0, %v1617
  %1619 = vmatprep.mubr.bf16.mxu0 0
  %1620 = vmatmul.mubr.bf16.gmra.mxu0 %v1350
  %v1621 = vpop.f32.mrf.mxu0
  %v1622 = vadd.f32 0.0, %v1621
  %v1623 = vpop.f32.mrf.mxu0
  %v1624 = vadd.f32 0.0, %v1623
  %v1625 = vpop.f32.mrf.mxu0
  %v1626 = vadd.f32 0.0, %v1625
  %v1627 = vpop.f32.mrf.mxu0
  %v1628 = vadd.f32 0.0, %v1627
  %1629 = vmatprep.mubr.bf16.mxu0 0
  %1630 = vmatmul.mubr.bf16.gmra.mxu0 %v1353
  %v1631 = vpop.f32.mrf.mxu0
  %v1632 = vadd.f32 0.0, %v1631
  %v1633 = vpop.f32.mrf.mxu0
  %v1634 = vadd.f32 0.0, %v1633
  %v1635 = vpop.f32.mrf.mxu0
  %v1636 = vadd.f32 0.0, %v1635
  %v1637 = vpop.f32.mrf.mxu0
  %v1638 = vadd.f32 0.0, %v1637
  %1639 = vmatprep.mubr.bf16.mxu0 0
  %1640 = vmatmul.mubr.bf16.gmra.mxu0 %v1356
  %v1641 = vpop.f32.mrf.mxu0
  %v1642 = vadd.f32 0.0, %v1641
  %v1643 = vpop.f32.mrf.mxu0
  %v1644 = vadd.f32 0.0, %v1643
  %v1645 = vpop.f32.mrf.mxu0
  %v1646 = vadd.f32 0.0, %v1645
  %v1647 = vpop.f32.mrf.mxu0
  %v1648 = vadd.f32 0.0, %v1647
  %1649 = vdwg.mxu0
  %1650 = vmatprep.subr.bf16.mxu0 0
  %1651 = vmatpush1.bf16.msra.mxu0 0
  %1652 = vmatprep.subr.bf16.mxu0 0
  %1653 = vmatpush1.bf16.msra.mxu0 0
  %1654 = vmatprep.subr.bf16.mxu0 0
  %1655 = vmatpush1.bf16.msra.mxu0 0
  %1656 = vmatprep.subr.bf16.mxu0 0
  %1657 = vmatpush1.bf16.msra.mxu0 0
  %1658 = vmatprep.subr.bf16.mxu0 0
  %1659 = vmatpush1.bf16.msra.mxu0 %v1276
  %1660 = vmatprep.subr.bf16.mxu0 0
  %1661 = vmatpush1.bf16.msra.mxu0 %v1258
  %1662 = vmatprep.subr.bf16.mxu0 0
  %1663 = vmatpush1.bf16.msra.mxu0 %v1240
  %1664 = vmatprep.subr.bf16.mxu0 0
  %1665 = vmatpush1.bf16.msra.mxu0 %v1222
  %1666 = vmatprep.subr.bf16.mxu0 0
  %1667 = vmatpush2.bf16.msra.mxu0 0
  %1668 = vmatprep.subr.bf16.mxu0 0
  %1669 = vmatpush2.bf16.msra.mxu0 0
  %1670 = vmatprep.subr.bf16.mxu0 0
  %1671 = vmatpush2.bf16.msra.mxu0 0
  %1672 = vmatprep.subr.bf16.mxu0 0
  %1673 = vmatpush2.bf16.msra.mxu0 0
  %1674 = vmatprep.subr.bf16.mxu0 0
  %1675 = vmatpush2.bf16.msra.mxu0 0
  %1676 = vmatprep.subr.bf16.mxu0 0
  %1677 = vmatpush2.bf16.msra.mxu0 0
  %1678 = vmatprep.subr.bf16.mxu0 0
  %1679 = vmatpush2.bf16.msra.mxu0 0
  %1680 = vmatprep.subr.bf16.mxu0 0
  %1681 = vmatpush2.bf16.msra.mxu0 0
  %1682 = vmatprep.mubr.bf16.mxu0 0
  %1683 = vmatmul.mubr.bf16.gmra.mxu0 %v1347
  %v1684 = vpop.f32.mrf.mxu0
  %v1685 = vadd.f32 0.0, %v1684
  %v1686 = vpop.f32.mrf.mxu0
  %v1687 = vpop.f32.mrf.mxu0
  %v1688 = vadd.f32 0.0, %v1687
  %v1689 = vpop.f32.mrf.mxu0
  %1690 = vmatprep.mubr.bf16.mxu0 0
  %1691 = vmatmul.mubr.bf16.gmra.mxu0 %v1350
  %v1692 = vpop.f32.mrf.mxu0
  %v1693 = vadd.f32 0.0, %v1692
  %v1694 = vpop.f32.mrf.mxu0
  %v1695 = vpop.f32.mrf.mxu0
  %v1696 = vadd.f32 0.0, %v1695
  %v1697 = vpop.f32.mrf.mxu0
  %1698 = vmatprep.mubr.bf16.mxu0 0
  %1699 = vmatmul.mubr.bf16.gmra.mxu0 %v1353
  %v1700 = vpop.f32.mrf.mxu0
  %v1701 = vadd.f32 0.0, %v1700
  %v1702 = vpop.f32.mrf.mxu0
  %v1703 = vpop.f32.mrf.mxu0
  %v1704 = vadd.f32 0.0, %v1703
  %v1705 = vpop.f32.mrf.mxu0
  %1706 = vmatprep.mubr.bf16.mxu0 0
  %1707 = vmatmul.mubr.bf16.gmra.mxu0 %v1356
  %v1708 = vpop.f32.mrf.mxu0
  %v1709 = vadd.f32 0.0, %v1708
  %v1710 = vpop.f32.mrf.mxu0
  %v1711 = vpop.f32.mrf.mxu0
  %v1712 = vadd.f32 0.0, %v1711
  %v1713 = vpop.f32.mrf.mxu0
  %1714 = vdwg.mxu0
  %v1715 = vadd.f32 %v854, %v1393
  %v1716 = vadd.f32 %v856, %v1395
  %v1717 = vadd.f32 %v927, %v1466
  %v1718 = vadd.f32 %v929, %v1468
  %v1719 = vadd.f32 %v1000, %v1539
  %v1720 = vadd.f32 %v1002, %v1541
  %v1721 = vadd.f32 %v1073, %v1612
  %v1722 = vadd.f32 %v1075, %v1614
  %v1723 = vadd.f32 %v1146, %v1685
  %v1724 = vadd.f32 %v858, %v1397
  %v1725 = vadd.f32 %v860, %v1399
  %v1726 = vadd.f32 %v931, %v1470
  %v1727 = vadd.f32 %v933, %v1472
  %v1728 = vadd.f32 %v1004, %v1543
  %v1729 = vadd.f32 %v1006, %v1545
  %v1730 = vadd.f32 %v1077, %v1616
  %v1731 = vadd.f32 %v1079, %v1618
  %v1732 = vadd.f32 %v1149, %v1688
  %v1733 = vadd.f32 %v864, %v1403
  %v1734 = vadd.f32 %v866, %v1405
  %v1735 = vadd.f32 %v937, %v1476
  %v1736 = vadd.f32 %v939, %v1478
  %v1737 = vadd.f32 %v1010, %v1549
  %v1738 = vadd.f32 %v1012, %v1551
  %v1739 = vadd.f32 %v1083, %v1622
  %v1740 = vadd.f32 %v1085, %v1624
  %v1741 = vadd.f32 %v1154, %v1693
  %v1742 = vadd.f32 %v868, %v1407
  %v1743 = vadd.f32 %v870, %v1409
  %v1744 = vadd.f32 %v941, %v1480
  %v1745 = vadd.f32 %v943, %v1482
  %v1746 = vadd.f32 %v1014, %v1553
  %v1747 = vadd.f32 %v1016, %v1555
  %v1748 = vadd.f32 %v1087, %v1626
  %v1749 = vadd.f32 %v1089, %v1628
  %v1750 = vadd.f32 %v1157, %v1696
  %v1751 = vadd.f32 %v874, %v1413
  %v1752 = vadd.f32 %v876, %v1415
  %v1753 = vadd.f32 %v947, %v1486
  %v1754 = vadd.f32 %v949, %v1488
  %v1755 = vadd.f32 %v1020, %v1559
  %v1756 = vadd.f32 %v1022, %v1561
  %v1757 = vadd.f32 %v1093, %v1632
  %v1758 = vadd.f32 %v1095, %v1634
  %v1759 = vadd.f32 %v1162, %v1701
  %v1760 = vadd.f32 %v878, %v1417
  %v1761 = vadd.f32 %v880, %v1419
  %v1762 = vadd.f32 %v951, %v1490
  %v1763 = vadd.f32 %v953, %v1492
  %v1764 = vadd.f32 %v1024, %v1563
  %v1765 = vadd.f32 %v1026, %v1565
  %v1766 = vadd.f32 %v1097, %v1636
  %v1767 = vadd.f32 %v1099, %v1638
  %v1768 = vadd.f32 %v1165, %v1704
  %v1769 = vadd.f32 %v884, %v1423
  %v1770 = vadd.f32 %v886, %v1425
  %v1771 = vadd.f32 %v957, %v1496
  %v1772 = vadd.f32 %v959, %v1498
  %v1773 = vadd.f32 %v1030, %v1569
  %v1774 = vadd.f32 %v1032, %v1571
  %v1775 = vadd.f32 %v1103, %v1642
  %v1776 = vadd.f32 %v1105, %v1644
  %v1777 = vadd.f32 %v1170, %v1709
  %v1778 = vadd.f32 %v888, %v1427
  %v1779 = vadd.f32 %v890, %v1429
  %v1780 = vadd.f32 %v961, %v1500
  %v1781 = vadd.f32 %v963, %v1502
  %v1782 = vadd.f32 %v1034, %v1573
  %v1783 = vadd.f32 %v1036, %v1575
  %v1784 = vadd.f32 %v1107, %v1646
  %v1785 = vadd.f32 %v1109, %v1648
  %v1786 = vadd.f32 %v1173, %v1712
  %s1787 = scalar_lea.vmem %s1, 96
  %v1788 = vld [vmem:[%s1787] sm:$0xf]
  %v1789 = vld [vmem:[%s1787 + $0x4] sm:$0xf]
  %v1790 = vld [vmem:[%s1787 + $0x8] sm:$0xf]
  %v1791 = vld [vmem:[%s1787 + $0xc] sm:$0xf]
  %v1792 = vld [vmem:[%s1787 + $0x10] sm:$0xf]
  %v1793 = vld [vmem:[%s1787 + $0x14] sm:$0xf]
  %v1794 = vld [vmem:[%s1787 + $0x18] sm:$0xf]
  %v1795 = vld [vmem:[%s1787 + $0x1c] sm:$0xf]
  %v1804 = vunpack.c.l.b16 %v1788
  %v1805 = vunpack.c.l.b16 %v1789
  %v1806 = vunpack.c.l.b16 %v1790
  %v1807 = vunpack.c.l.b16 %v1791
  %v1808 = vunpack.c.l.b16 %v1792
  %v1809 = vunpack.c.l.b16 %v1793
  %v1810 = vunpack.c.l.b16 %v1794
  %v1811 = vunpack.c.l.b16 %v1795
  %v1812 = vpack.c.b16 %v1805, %v1804
  %v1813 = vpack.c.b16 %v1807, %v1806
  %v1814 = vpack.c.b16 %v1809, %v1808
  %v1815 = vpack.c.b16 %v1811, %v1810
  %1816 = vrot.lane.b32.xlu0 %v204, 94
  %v1817 = vpop.permute.xlu0 %1816
  %1818 = vrot.lane.b32.xlu0 %v205, 94
  %v1819 = vpop.permute.xlu0 %1818
  %1820 = vrot.lane.b32.xlu0 %v206, 94
  %v1821 = vpop.permute.xlu0 %1820
  %1822 = vrot.lane.b32.xlu0 %v207, 94
  %v1823 = vpop.permute.xlu0 %1822
  %1824 = vrot.lane.b32.xlu0 %v208, 94
  %v1825 = vpop.permute.xlu0 %1824
  %1826 = vrot.lane.b32.xlu0 %v209, 94
  %v1827 = vpop.permute.xlu0 %1826
  %1828 = vrot.lane.b32.xlu0 %v210, 94
  %v1829 = vpop.permute.xlu0 %1828
  %1830 = vrot.lane.b32.xlu0 %v211, 94
  %v1831 = vpop.permute.xlu0 %1830
  %1832 = vrot.lane.b32.xlu0 %v212, 94
  %v1833 = vpop.permute.xlu0 %1832
  %1834 = vrot.lane.b32.xlu0 %v213, 94
  %v1835 = vpop.permute.xlu0 %1834
  %1836 = vrot.lane.b32.xlu0 %v214, 94
  %v1837 = vpop.permute.xlu0 %1836
  %1838 = vrot.lane.b32.xlu0 %v215, 94
  %v1839 = vpop.permute.xlu0 %1838
  %1840 = vrot.lane.b32.xlu0 %v216, 94
  %v1841 = vpop.permute.xlu0 %1840
  %1842 = vrot.lane.b32.xlu0 %v217, 94
  %v1843 = vpop.permute.xlu0 %1842
  %1844 = vrot.lane.b32.xlu0 %v218, 94
  %v1845 = vpop.permute.xlu0 %1844
  %1846 = vrot.lane.b32.xlu0 %v219, 94
  %v1847 = vpop.permute.xlu0 %1846
  %1848 = vrot.lane.b32.xlu0 %v220, 94
  %v1849 = vpop.permute.xlu0 %1848
  %1850 = vrot.lane.b32.xlu0 %v221, 94
  %v1851 = vpop.permute.xlu0 %1850
  %1852 = vrot.lane.b32.xlu0 %v222, 94
  %v1853 = vpop.permute.xlu0 %1852
  %1854 = vrot.lane.b32.xlu0 %v223, 94
  %v1855 = vpop.permute.xlu0 %1854
  %1856 = vrot.lane.b32.xlu0 %v224, 94
  %v1857 = vpop.permute.xlu0 %1856
  %1858 = vrot.lane.b32.xlu0 %v225, 94
  %v1859 = vpop.permute.xlu0 %1858
  %1860 = vrot.lane.b32.xlu0 %v226, 94
  %v1861 = vpop.permute.xlu0 %1860
  %1862 = vrot.lane.b32.xlu0 %v227, 94
  %v1863 = vpop.permute.xlu0 %1862
  %1864 = vrot.lane.b32.xlu0 %v228, 94
  %v1865 = vpop.permute.xlu0 %1864
  %1866 = vrot.lane.b32.xlu0 %v229, 94
  %v1867 = vpop.permute.xlu0 %1866
  %1868 = vrot.lane.b32.xlu0 %v230, 94
  %v1869 = vpop.permute.xlu0 %1868
  %1870 = vrot.lane.b32.xlu0 %v231, 94
  %v1871 = vpop.permute.xlu0 %1870
  %1872 = vrot.lane.b32.xlu0 %v232, 94
  %v1873 = vpop.permute.xlu0 %1872
  %1874 = vrot.lane.b32.xlu0 %v233, 94
  %v1875 = vpop.permute.xlu0 %1874
  %1876 = vrot.lane.b32.xlu0 %v234, 94
  %v1877 = vpop.permute.xlu0 %1876
  %1878 = vrot.lane.b32.xlu0 %v235, 94
  %v1879 = vpop.permute.xlu0 %1878
  %1880 = vrot.lane.b32.xlu0 %v236, 94
  %v1881 = vpop.permute.xlu0 %1880
  %1882 = vrot.lane.b32.xlu0 %v237, 94
  %v1883 = vpop.permute.xlu0 %1882
  %1884 = vrot.lane.b32.xlu0 %v238, 94
  %v1885 = vpop.permute.xlu0 %1884
  %1886 = vrot.lane.b32.xlu0 %v239, 94
  %v1887 = vpop.permute.xlu0 %1886
  %vm1888 = vcmask 769024
  %v1889 = vsel %vm1888, %v1817, %v1819
  %v1890 = vsel %vm1888, %v1819, %v1821
  %v1891 = vsel %vm1888, %v1821, %v1823
  %v1892 = vsel %vm1888, %v1823, %v1825
  %v1893 = vsel %vm1888, %v1825, %v1827
  %v1894 = vsel %vm1888, %v1827, %v1829
  %v1895 = vsel %vm1888, %v1829, %v1831
  %v1896 = vsel %vm1888, %v1831, %v1833
  %v1897 = vsel %vm1888, %v1835, %v1837
  %v1898 = vsel %vm1888, %v1837, %v1839
  %v1899 = vsel %vm1888, %v1839, %v1841
  %v1900 = vsel %vm1888, %v1841, %v1843
  %v1901 = vsel %vm1888, %v1843, %v1845
  %v1902 = vsel %vm1888, %v1845, %v1847
  %v1903 = vsel %vm1888, %v1847, %v1849
  %v1904 = vsel %vm1888, %v1849, %v1851
  %v1905 = vsel %vm1888, %v1853, %v1855
  %v1906 = vsel %vm1888, %v1855, %v1857
  %v1907 = vsel %vm1888, %v1857, %v1859
  %v1908 = vsel %vm1888, %v1859, %v1861
  %v1909 = vsel %vm1888, %v1861, %v1863
  %v1910 = vsel %vm1888, %v1863, %v1865
  %v1911 = vsel %vm1888, %v1865, %v1867
  %v1912 = vsel %vm1888, %v1867, %v1869
  %v1913 = vsel %vm1888, %v1871, %v1873
  %v1914 = vsel %vm1888, %v1873, %v1875
  %v1915 = vsel %vm1888, %v1875, %v1877
  %v1916 = vsel %vm1888, %v1877, %v1879
  %v1917 = vsel %vm1888, %v1879, %v1881
  %v1918 = vsel %vm1888, %v1881, %v1883
  %v1919 = vsel %vm1888, %v1883, %v1885
  %v1920 = vsel %vm1888, %v1885, %v1887
  %v1958 = vsel %vm381, %v1812, 0
  %v1961 = vsel %vm381, %v1813, 0
  %v1964 = vsel %vm381, %v1814, 0
  %v1967 = vsel %vm381, %v1815, 0
  %1969 = vmatprep.subr.bf16.mxu0 0
  %1970 = vmatpush1.bf16.msra.mxu0 0
  %1971 = vmatprep.subr.bf16.mxu0 0
  %1972 = vmatpush1.bf16.msra.mxu0 0
  %1973 = vmatprep.subr.bf16.mxu0 0
  %1974 = vmatpush1.bf16.msra.mxu0 0
  %1975 = vmatprep.subr.bf16.mxu0 0
  %1976 = vmatpush1.bf16.msra.mxu0 0
  %1977 = vmatprep.subr.bf16.mxu0 %v1914
  %1978 = vmatpush1.bf16.msra.mxu0 %v1913
  %1979 = vmatprep.subr.bf16.mxu0 %v1906
  %1980 = vmatpush1.bf16.msra.mxu0 %v1905
  %1981 = vmatprep.subr.bf16.mxu0 %v1898
  %1982 = vmatpush1.bf16.msra.mxu0 %v1897
  %1983 = vmatprep.subr.bf16.mxu0 %v1890
  %1984 = vmatpush1.bf16.msra.mxu0 %v1889
  %1985 = vmatprep.subr.bf16.mxu0 0
  %1986 = vmatpush2.bf16.msra.mxu0 0
  %1987 = vmatprep.subr.bf16.mxu0 0
  %1988 = vmatpush2.bf16.msra.mxu0 0
  %1989 = vmatprep.subr.bf16.mxu0 0
  %1990 = vmatpush2.bf16.msra.mxu0 0
  %1991 = vmatprep.subr.bf16.mxu0 0
  %1992 = vmatpush2.bf16.msra.mxu0 0
  %1993 = vmatprep.subr.bf16.mxu0 0
  %1994 = vmatpush2.bf16.msra.mxu0 0
  %1995 = vmatprep.subr.bf16.mxu0 0
  %1996 = vmatpush2.bf16.msra.mxu0 0
  %1997 = vmatprep.subr.bf16.mxu0 0
  %1998 = vmatpush2.bf16.msra.mxu0 0
  %1999 = vmatprep.subr.bf16.mxu0 0
  %2000 = vmatpush2.bf16.msra.mxu0 0
  %2001 = vmatprep.mubr.bf16.mxu0 0
  %2002 = vmatmul.mubr.bf16.gmra.mxu0 %v1958
  %v2003 = vpop.f32.mrf.mxu0
  %v2004 = vadd.f32 0.0, %v2003
  %v2005 = vpop.f32.mrf.mxu0
  %v2006 = vadd.f32 0.0, %v2005
  %v2007 = vpop.f32.mrf.mxu0
  %v2008 = vadd.f32 0.0, %v2007
  %v2009 = vpop.f32.mrf.mxu0
  %v2010 = vadd.f32 0.0, %v2009
  %2011 = vmatprep.mubr.bf16.mxu0 0
  %2012 = vmatmul.mubr.bf16.gmra.mxu0 %v1961
  %v2013 = vpop.f32.mrf.mxu0
  %v2014 = vadd.f32 0.0, %v2013
  %v2015 = vpop.f32.mrf.mxu0
  %v2016 = vadd.f32 0.0, %v2015
  %v2017 = vpop.f32.mrf.mxu0
  %v2018 = vadd.f32 0.0, %v2017
  %v2019 = vpop.f32.mrf.mxu0
  %v2020 = vadd.f32 0.0, %v2019
  %2021 = vmatprep.mubr.bf16.mxu0 0
  %2022 = vmatmul.mubr.bf16.gmra.mxu0 %v1964
  %v2023 = vpop.f32.mrf.mxu0
  %v2024 = vadd.f32 0.0, %v2023
  %v2025 = vpop.f32.mrf.mxu0
  %v2026 = vadd.f32 0.0, %v2025
  %v2027 = vpop.f32.mrf.mxu0
  %v2028 = vadd.f32 0.0, %v2027
  %v2029 = vpop.f32.mrf.mxu0
  %v2030 = vadd.f32 0.0, %v2029
  %2031 = vmatprep.mubr.bf16.mxu0 0
  %2032 = vmatmul.mubr.bf16.gmra.mxu0 %v1967
  %v2033 = vpop.f32.mrf.mxu0
  %v2034 = vadd.f32 0.0, %v2033
  %v2035 = vpop.f32.mrf.mxu0
  %v2036 = vadd.f32 0.0, %v2035
  %v2037 = vpop.f32.mrf.mxu0
  %v2038 = vadd.f32 0.0, %v2037
  %v2039 = vpop.f32.mrf.mxu0
  %v2040 = vadd.f32 0.0, %v2039
  %2041 = vdwg.mxu0
  %2042 = vmatprep.subr.bf16.mxu0 0
  %2043 = vmatpush1.bf16.msra.mxu0 0
  %2044 = vmatprep.subr.bf16.mxu0 0
  %2045 = vmatpush1.bf16.msra.mxu0 0
  %2046 = vmatprep.subr.bf16.mxu0 0
  %2047 = vmatpush1.bf16.msra.mxu0 0
  %2048 = vmatprep.subr.bf16.mxu0 0
  %2049 = vmatpush1.bf16.msra.mxu0 0
  %2050 = vmatprep.subr.bf16.mxu0 %v1916
  %2051 = vmatpush1.bf16.msra.mxu0 %v1915
  %2052 = vmatprep.subr.bf16.mxu0 %v1908
  %2053 = vmatpush1.bf16.msra.mxu0 %v1907
  %2054 = vmatprep.subr.bf16.mxu0 %v1900
  %2055 = vmatpush1.bf16.msra.mxu0 %v1899
  %2056 = vmatprep.subr.bf16.mxu0 %v1892
  %2057 = vmatpush1.bf16.msra.mxu0 %v1891
  %2058 = vmatprep.subr.bf16.mxu0 0
  %2059 = vmatpush2.bf16.msra.mxu0 0
  %2060 = vmatprep.subr.bf16.mxu0 0
  %2061 = vmatpush2.bf16.msra.mxu0 0
  %2062 = vmatprep.subr.bf16.mxu0 0
  %2063 = vmatpush2.bf16.msra.mxu0 0
  %2064 = vmatprep.subr.bf16.mxu0 0
  %2065 = vmatpush2.bf16.msra.mxu0 0
  %2066 = vmatprep.subr.bf16.mxu0 0
  %2067 = vmatpush2.bf16.msra.mxu0 0
  %2068 = vmatprep.subr.bf16.mxu0 0
  %2069 = vmatpush2.bf16.msra.mxu0 0
  %2070 = vmatprep.subr.bf16.mxu0 0
  %2071 = vmatpush2.bf16.msra.mxu0 0
  %2072 = vmatprep.subr.bf16.mxu0 0
  %2073 = vmatpush2.bf16.msra.mxu0 0
  %2074 = vmatprep.mubr.bf16.mxu0 0
  %2075 = vmatmul.mubr.bf16.gmra.mxu0 %v1958
  %v2076 = vpop.f32.mrf.mxu0
  %v2077 = vadd.f32 0.0, %v2076
  %v2078 = vpop.f32.mrf.mxu0
  %v2079 = vadd.f32 0.0, %v2078
  %v2080 = vpop.f32.mrf.mxu0
  %v2081 = vadd.f32 0.0, %v2080
  %v2082 = vpop.f32.mrf.mxu0
  %v2083 = vadd.f32 0.0, %v2082
  %2084 = vmatprep.mubr.bf16.mxu0 0
  %2085 = vmatmul.mubr.bf16.gmra.mxu0 %v1961
  %v2086 = vpop.f32.mrf.mxu0
  %v2087 = vadd.f32 0.0, %v2086
  %v2088 = vpop.f32.mrf.mxu0
  %v2089 = vadd.f32 0.0, %v2088
  %v2090 = vpop.f32.mrf.mxu0
  %v2091 = vadd.f32 0.0, %v2090
  %v2092 = vpop.f32.mrf.mxu0
  %v2093 = vadd.f32 0.0, %v2092
  %2094 = vmatprep.mubr.bf16.mxu0 0
  %2095 = vmatmul.mubr.bf16.gmra.mxu0 %v1964
  %v2096 = vpop.f32.mrf.mxu0
  %v2097 = vadd.f32 0.0, %v2096
  %v2098 = vpop.f32.mrf.mxu0
  %v2099 = vadd.f32 0.0, %v2098
  %v2100 = vpop.f32.mrf.mxu0
  %v2101 = vadd.f32 0.0, %v2100
  %v2102 = vpop.f32.mrf.mxu0
  %v2103 = vadd.f32 0.0, %v2102
  %2104 = vmatprep.mubr.bf16.mxu0 0
  %2105 = vmatmul.mubr.bf16.gmra.mxu0 %v1967
  %v2106 = vpop.f32.mrf.mxu0
  %v2107 = vadd.f32 0.0, %v2106
  %v2108 = vpop.f32.mrf.mxu0
  %v2109 = vadd.f32 0.0, %v2108
  %v2110 = vpop.f32.mrf.mxu0
  %v2111 = vadd.f32 0.0, %v2110
  %v2112 = vpop.f32.mrf.mxu0
  %v2113 = vadd.f32 0.0, %v2112
  %2114 = vdwg.mxu0
  %2115 = vmatprep.subr.bf16.mxu0 0
  %2116 = vmatpush1.bf16.msra.mxu0 0
  %2117 = vmatprep.subr.bf16.mxu0 0
  %2118 = vmatpush1.bf16.msra.mxu0 0
  %2119 = vmatprep.subr.bf16.mxu0 0
  %2120 = vmatpush1.bf16.msra.mxu0 0
  %2121 = vmatprep.subr.bf16.mxu0 0
  %2122 = vmatpush1.bf16.msra.mxu0 0
  %2123 = vmatprep.subr.bf16.mxu0 %v1918
  %2124 = vmatpush1.bf16.msra.mxu0 %v1917
  %2125 = vmatprep.subr.bf16.mxu0 %v1910
  %2126 = vmatpush1.bf16.msra.mxu0 %v1909
  %2127 = vmatprep.subr.bf16.mxu0 %v1902
  %2128 = vmatpush1.bf16.msra.mxu0 %v1901
  %2129 = vmatprep.subr.bf16.mxu0 %v1894
  %2130 = vmatpush1.bf16.msra.mxu0 %v1893
  %2131 = vmatprep.subr.bf16.mxu0 0
  %2132 = vmatpush2.bf16.msra.mxu0 0
  %2133 = vmatprep.subr.bf16.mxu0 0
  %2134 = vmatpush2.bf16.msra.mxu0 0
  %2135 = vmatprep.subr.bf16.mxu0 0
  %2136 = vmatpush2.bf16.msra.mxu0 0
  %2137 = vmatprep.subr.bf16.mxu0 0
  %2138 = vmatpush2.bf16.msra.mxu0 0
  %2139 = vmatprep.subr.bf16.mxu0 0
  %2140 = vmatpush2.bf16.msra.mxu0 0
  %2141 = vmatprep.subr.bf16.mxu0 0
  %2142 = vmatpush2.bf16.msra.mxu0 0
  %2143 = vmatprep.subr.bf16.mxu0 0
  %2144 = vmatpush2.bf16.msra.mxu0 0
  %2145 = vmatprep.subr.bf16.mxu0 0
  %2146 = vmatpush2.bf16.msra.mxu0 0
  %2147 = vmatprep.mubr.bf16.mxu0 0
  %2148 = vmatmul.mubr.bf16.gmra.mxu0 %v1958
  %v2149 = vpop.f32.mrf.mxu0
  %v2150 = vadd.f32 0.0, %v2149
  %v2151 = vpop.f32.mrf.mxu0
  %v2152 = vadd.f32 0.0, %v2151
  %v2153 = vpop.f32.mrf.mxu0
  %v2154 = vadd.f32 0.0, %v2153
  %v2155 = vpop.f32.mrf.mxu0
  %v2156 = vadd.f32 0.0, %v2155
  %2157 = vmatprep.mubr.bf16.mxu0 0
  %2158 = vmatmul.mubr.bf16.gmra.mxu0 %v1961
  %v2159 = vpop.f32.mrf.mxu0
  %v2160 = vadd.f32 0.0, %v2159
  %v2161 = vpop.f32.mrf.mxu0
  %v2162 = vadd.f32 0.0, %v2161
  %v2163 = vpop.f32.mrf.mxu0
  %v2164 = vadd.f32 0.0, %v2163
  %v2165 = vpop.f32.mrf.mxu0
  %v2166 = vadd.f32 0.0, %v2165
  %2167 = vmatprep.mubr.bf16.mxu0 0
  %2168 = vmatmul.mubr.bf16.gmra.mxu0 %v1964
  %v2169 = vpop.f32.mrf.mxu0
  %v2170 = vadd.f32 0.0, %v2169
  %v2171 = vpop.f32.mrf.mxu0
  %v2172 = vadd.f32 0.0, %v2171
  %v2173 = vpop.f32.mrf.mxu0
  %v2174 = vadd.f32 0.0, %v2173
  %v2175 = vpop.f32.mrf.mxu0
  %v2176 = vadd.f32 0.0, %v2175
  %2177 = vmatprep.mubr.bf16.mxu0 0
  %2178 = vmatmul.mubr.bf16.gmra.mxu0 %v1967
  %v2179 = vpop.f32.mrf.mxu0
  %v2180 = vadd.f32 0.0, %v2179
  %v2181 = vpop.f32.mrf.mxu0
  %v2182 = vadd.f32 0.0, %v2181
  %v2183 = vpop.f32.mrf.mxu0
  %v2184 = vadd.f32 0.0, %v2183
  %v2185 = vpop.f32.mrf.mxu0
  %v2186 = vadd.f32 0.0, %v2185
  %2187 = vdwg.mxu0
  %2188 = vmatprep.subr.bf16.mxu0 0
  %2189 = vmatpush1.bf16.msra.mxu0 0
  %2190 = vmatprep.subr.bf16.mxu0 0
  %2191 = vmatpush1.bf16.msra.mxu0 0
  %2192 = vmatprep.subr.bf16.mxu0 0
  %2193 = vmatpush1.bf16.msra.mxu0 0
  %2194 = vmatprep.subr.bf16.mxu0 0
  %2195 = vmatpush1.bf16.msra.mxu0 0
  %2196 = vmatprep.subr.bf16.mxu0 %v1920
  %2197 = vmatpush1.bf16.msra.mxu0 %v1919
  %2198 = vmatprep.subr.bf16.mxu0 %v1912
  %2199 = vmatpush1.bf16.msra.mxu0 %v1911
  %2200 = vmatprep.subr.bf16.mxu0 %v1904
  %2201 = vmatpush1.bf16.msra.mxu0 %v1903
  %2202 = vmatprep.subr.bf16.mxu0 %v1896
  %2203 = vmatpush1.bf16.msra.mxu0 %v1895
  %2204 = vmatprep.subr.bf16.mxu0 0
  %2205 = vmatpush2.bf16.msra.mxu0 0
  %2206 = vmatprep.subr.bf16.mxu0 0
  %2207 = vmatpush2.bf16.msra.mxu0 0
  %2208 = vmatprep.subr.bf16.mxu0 0
  %2209 = vmatpush2.bf16.msra.mxu0 0
  %2210 = vmatprep.subr.bf16.mxu0 0
  %2211 = vmatpush2.bf16.msra.mxu0 0
  %2212 = vmatprep.subr.bf16.mxu0 0
  %2213 = vmatpush2.bf16.msra.mxu0 0
  %2214 = vmatprep.subr.bf16.mxu0 0
  %2215 = vmatpush2.bf16.msra.mxu0 0
  %2216 = vmatprep.subr.bf16.mxu0 0
  %2217 = vmatpush2.bf16.msra.mxu0 0
  %2218 = vmatprep.subr.bf16.mxu0 0
  %2219 = vmatpush2.bf16.msra.mxu0 0
  %2220 = vmatprep.mubr.bf16.mxu0 0
  %2221 = vmatmul.mubr.bf16.gmra.mxu0 %v1958
  %v2222 = vpop.f32.mrf.mxu0
  %v2223 = vadd.f32 0.0, %v2222
  %v2224 = vpop.f32.mrf.mxu0
  %v2225 = vadd.f32 0.0, %v2224
  %v2226 = vpop.f32.mrf.mxu0
  %v2227 = vadd.f32 0.0, %v2226
  %v2228 = vpop.f32.mrf.mxu0
  %v2229 = vadd.f32 0.0, %v2228
  %2230 = vmatprep.mubr.bf16.mxu0 0
  %2231 = vmatmul.mubr.bf16.gmra.mxu0 %v1961
  %v2232 = vpop.f32.mrf.mxu0
  %v2233 = vadd.f32 0.0, %v2232
  %v2234 = vpop.f32.mrf.mxu0
  %v2235 = vadd.f32 0.0, %v2234
  %v2236 = vpop.f32.mrf.mxu0
  %v2237 = vadd.f32 0.0, %v2236
  %v2238 = vpop.f32.mrf.mxu0
  %v2239 = vadd.f32 0.0, %v2238
  %2240 = vmatprep.mubr.bf16.mxu0 0
  %2241 = vmatmul.mubr.bf16.gmra.mxu0 %v1964
  %v2242 = vpop.f32.mrf.mxu0
  %v2243 = vadd.f32 0.0, %v2242
  %v2244 = vpop.f32.mrf.mxu0
  %v2245 = vadd.f32 0.0, %v2244
  %v2246 = vpop.f32.mrf.mxu0
  %v2247 = vadd.f32 0.0, %v2246
  %v2248 = vpop.f32.mrf.mxu0
  %v2249 = vadd.f32 0.0, %v2248
  %2250 = vmatprep.mubr.bf16.mxu0 0
  %2251 = vmatmul.mubr.bf16.gmra.mxu0 %v1967
  %v2252 = vpop.f32.mrf.mxu0
  %v2253 = vadd.f32 0.0, %v2252
  %v2254 = vpop.f32.mrf.mxu0
  %v2255 = vadd.f32 0.0, %v2254
  %v2256 = vpop.f32.mrf.mxu0
  %v2257 = vadd.f32 0.0, %v2256
  %v2258 = vpop.f32.mrf.mxu0
  %v2259 = vadd.f32 0.0, %v2258
  %2260 = vdwg.mxu0
  %2261 = vmatprep.subr.bf16.mxu0 0
  %2262 = vmatpush1.bf16.msra.mxu0 0
  %2263 = vmatprep.subr.bf16.mxu0 0
  %2264 = vmatpush1.bf16.msra.mxu0 0
  %2265 = vmatprep.subr.bf16.mxu0 0
  %2266 = vmatpush1.bf16.msra.mxu0 0
  %2267 = vmatprep.subr.bf16.mxu0 0
  %2268 = vmatpush1.bf16.msra.mxu0 0
  %2269 = vmatprep.subr.bf16.mxu0 0
  %2270 = vmatpush1.bf16.msra.mxu0 %v1887
  %2271 = vmatprep.subr.bf16.mxu0 0
  %2272 = vmatpush1.bf16.msra.mxu0 %v1869
  %2273 = vmatprep.subr.bf16.mxu0 0
  %2274 = vmatpush1.bf16.msra.mxu0 %v1851
  %2275 = vmatprep.subr.bf16.mxu0 0
  %2276 = vmatpush1.bf16.msra.mxu0 %v1833
  %2277 = vmatprep.subr.bf16.mxu0 0
  %2278 = vmatpush2.bf16.msra.mxu0 0
  %2279 = vmatprep.subr.bf16.mxu0 0
  %2280 = vmatpush2.bf16.msra.mxu0 0
  %2281 = vmatprep.subr.bf16.mxu0 0
  %2282 = vmatpush2.bf16.msra.mxu0 0
  %2283 = vmatprep.subr.bf16.mxu0 0
  %2284 = vmatpush2.bf16.msra.mxu0 0
  %2285 = vmatprep.subr.bf16.mxu0 0
  %2286 = vmatpush2.bf16.msra.mxu0 0
  %2287 = vmatprep.subr.bf16.mxu0 0
  %2288 = vmatpush2.bf16.msra.mxu0 0
  %2289 = vmatprep.subr.bf16.mxu0 0
  %2290 = vmatpush2.bf16.msra.mxu0 0
  %2291 = vmatprep.subr.bf16.mxu0 0
  %2292 = vmatpush2.bf16.msra.mxu0 0
  %2293 = vmatprep.mubr.bf16.mxu0 0
  %2294 = vmatmul.mubr.bf16.gmra.mxu0 %v1958
  %v2295 = vpop.f32.mrf.mxu0
  %v2296 = vadd.f32 0.0, %v2295
  %v2297 = vpop.f32.mrf.mxu0
  %v2298 = vpop.f32.mrf.mxu0
  %v2299 = vadd.f32 0.0, %v2298
  %v2300 = vpop.f32.mrf.mxu0
  %2301 = vmatprep.mubr.bf16.mxu0 0
  %2302 = vmatmul.mubr.bf16.gmra.mxu0 %v1961
  %v2303 = vpop.f32.mrf.mxu0
  %v2304 = vadd.f32 0.0, %v2303
  %v2305 = vpop.f32.mrf.mxu0
  %v2306 = vpop.f32.mrf.mxu0
  %v2307 = vadd.f32 0.0, %v2306
  %v2308 = vpop.f32.mrf.mxu0
  %2309 = vmatprep.mubr.bf16.mxu0 0
  %2310 = vmatmul.mubr.bf16.gmra.mxu0 %v1964
  %v2311 = vpop.f32.mrf.mxu0
  %v2312 = vadd.f32 0.0, %v2311
  %v2313 = vpop.f32.mrf.mxu0
  %v2314 = vpop.f32.mrf.mxu0
  %v2315 = vadd.f32 0.0, %v2314
  %v2316 = vpop.f32.mrf.mxu0
  %2317 = vmatprep.mubr.bf16.mxu0 0
  %2318 = vmatmul.mubr.bf16.gmra.mxu0 %v1967
  %v2319 = vpop.f32.mrf.mxu0
  %v2320 = vadd.f32 0.0, %v2319
  %v2321 = vpop.f32.mrf.mxu0
  %v2322 = vpop.f32.mrf.mxu0
  %v2323 = vadd.f32 0.0, %v2322
  %v2324 = vpop.f32.mrf.mxu0
  %2325 = vdwg.mxu0
  %v2326 = vadd.f32 %v1715, %v2004
  %v2327 = vadd.f32 %v1716, %v2006
  %v2328 = vadd.f32 %v1717, %v2077
  %v2329 = vadd.f32 %v1718, %v2079
  %v2330 = vadd.f32 %v1719, %v2150
  %v2331 = vadd.f32 %v1720, %v2152
  %v2332 = vadd.f32 %v1721, %v2223
  %v2333 = vadd.f32 %v1722, %v2225
  %v2334 = vadd.f32 %v1723, %v2296
  %v2335 = vadd.f32 %v1724, %v2008
  %v2336 = vadd.f32 %v1725, %v2010
  %v2337 = vadd.f32 %v1726, %v2081
  %v2338 = vadd.f32 %v1727, %v2083
  %v2339 = vadd.f32 %v1728, %v2154
  %v2340 = vadd.f32 %v1729, %v2156
  %v2341 = vadd.f32 %v1730, %v2227
  %v2342 = vadd.f32 %v1731, %v2229
  %v2343 = vadd.f32 %v1732, %v2299
  %v2344 = vadd.f32 %v1733, %v2014
  %v2345 = vadd.f32 %v1734, %v2016
  %v2346 = vadd.f32 %v1735, %v2087
  %v2347 = vadd.f32 %v1736, %v2089
  %v2348 = vadd.f32 %v1737, %v2160
  %v2349 = vadd.f32 %v1738, %v2162
  %v2350 = vadd.f32 %v1739, %v2233
  %v2351 = vadd.f32 %v1740, %v2235
  %v2352 = vadd.f32 %v1741, %v2304
  %v2353 = vadd.f32 %v1742, %v2018
  %v2354 = vadd.f32 %v1743, %v2020
  %v2355 = vadd.f32 %v1744, %v2091
  %v2356 = vadd.f32 %v1745, %v2093
  %v2357 = vadd.f32 %v1746, %v2164
  %v2358 = vadd.f32 %v1747, %v2166
  %v2359 = vadd.f32 %v1748, %v2237
  %v2360 = vadd.f32 %v1749, %v2239
  %v2361 = vadd.f32 %v1750, %v2307
  %v2362 = vadd.f32 %v1751, %v2024
  %v2363 = vadd.f32 %v1752, %v2026
  %v2364 = vadd.f32 %v1753, %v2097
  %v2365 = vadd.f32 %v1754, %v2099
  %v2366 = vadd.f32 %v1755, %v2170
  %v2367 = vadd.f32 %v1756, %v2172
  %v2368 = vadd.f32 %v1757, %v2243
  %v2369 = vadd.f32 %v1758, %v2245
  %v2370 = vadd.f32 %v1759, %v2312
  %v2371 = vadd.f32 %v1760, %v2028
  %v2372 = vadd.f32 %v1761, %v2030
  %v2373 = vadd.f32 %v1762, %v2101
  %v2374 = vadd.f32 %v1763, %v2103
  %v2375 = vadd.f32 %v1764, %v2174
  %v2376 = vadd.f32 %v1765, %v2176
  %v2377 = vadd.f32 %v1766, %v2247
  %v2378 = vadd.f32 %v1767, %v2249
  %v2379 = vadd.f32 %v1768, %v2315
  %v2380 = vadd.f32 %v1769, %v2034
  %v2381 = vadd.f32 %v1770, %v2036
  %v2382 = vadd.f32 %v1771, %v2107
  %v2383 = vadd.f32 %v1772, %v2109
  %v2384 = vadd.f32 %v1773, %v2180
  %v2385 = vadd.f32 %v1774, %v2182
  %v2386 = vadd.f32 %v1775, %v2253
  %v2387 = vadd.f32 %v1776, %v2255
  %v2388 = vadd.f32 %v1777, %v2320
  %v2389 = vadd.f32 %v1778, %v2038
  %v2390 = vadd.f32 %v1779, %v2040
  %v2391 = vadd.f32 %v1780, %v2111
  %v2392 = vadd.f32 %v1781, %v2113
  %v2393 = vadd.f32 %v1782, %v2184
  %v2394 = vadd.f32 %v1783, %v2186
  %v2395 = vadd.f32 %v1784, %v2257
  %v2396 = vadd.f32 %v1785, %v2259
  %v2397 = vadd.f32 %v1786, %v2323
  %v2398 = vld [vmem:[%s2] sm:$0xff]
  %v2399 = vld [vmem:[%s2 + $0x8] sm:$0xff]
  %v2400 = vld [vmem:[%s2 + $0x10] sm:$0xff]
  %v2401 = vld [vmem:[%s2 + $0x18] sm:$0xff]
  %v2402 = vld [vmem:[%s2 + $0x20] sm:$0xff]
  %v2403 = vld [vmem:[%s2 + $0x28] sm:$0xff]
  %v2404 = vld [vmem:[%s2 + $0x30] sm:$0xff]
  %v2405 = vld [vmem:[%s2 + $0x38] sm:$0xff]
  %2407 = vset.pattern.permute.xlu0 0
  %2408 = vperm.xlu0 %2407, %v2398
  %v2409 = vpop.permute.xlu0 %2408
  %2412 = vset.pattern.permute.xlu0 0
  %2413 = vperm.xlu0 %2412, %v2399
  %v2414 = vpop.permute.xlu0 %2413
  %2417 = vset.pattern.permute.xlu0 0
  %2418 = vperm.xlu0 %2417, %v2400
  %v2419 = vpop.permute.xlu0 %2418
  %2422 = vset.pattern.permute.xlu0 0
  %2423 = vperm.xlu0 %2422, %v2401
  %v2424 = vpop.permute.xlu0 %2423
  %2427 = vset.pattern.permute.xlu0 0
  %2428 = vperm.xlu0 %2427, %v2402
  %v2429 = vpop.permute.xlu0 %2428
  %2432 = vset.pattern.permute.xlu0 0
  %2433 = vperm.xlu0 %2432, %v2403
  %v2434 = vpop.permute.xlu0 %2433
  %2437 = vset.pattern.permute.xlu0 0
  %2438 = vperm.xlu0 %2437, %v2404
  %v2439 = vpop.permute.xlu0 %2438
  %2442 = vset.pattern.permute.xlu0 0
  %2443 = vperm.xlu0 %2442, %v2405
  %v2444 = vpop.permute.xlu0 %2443
  %v2446 = vadd.f32 %v2326, %v2409
  %v2447 = vadd.f32 %v2327, %v2409
  %v2448 = vadd.f32 %v2328, %v2409
  %v2449 = vadd.f32 %v2329, %v2409
  %v2450 = vadd.f32 %v2330, %v2409
  %v2451 = vadd.f32 %v2331, %v2409
  %v2452 = vadd.f32 %v2332, %v2409
  %v2453 = vadd.f32 %v2333, %v2409
  %v2454 = vadd.f32 %v2334, %v2409
  %v2455 = vadd.f32 %v2335, %v2414
  %v2456 = vadd.f32 %v2336, %v2414
  %v2457 = vadd.f32 %v2337, %v2414
  %v2458 = vadd.f32 %v2338, %v2414
  %v2459 = vadd.f32 %v2339, %v2414
  %v2460 = vadd.f32 %v2340, %v2414
  %v2461 = vadd.f32 %v2341, %v2414
  %v2462 = vadd.f32 %v2342, %v2414
  %v2463 = vadd.f32 %v2343, %v2414
  %v2464 = vadd.f32 %v2344, %v2419
  %v2465 = vadd.f32 %v2345, %v2419
  %v2466 = vadd.f32 %v2346, %v2419
  %v2467 = vadd.f32 %v2347, %v2419
  %v2468 = vadd.f32 %v2348, %v2419
  %v2469 = vadd.f32 %v2349, %v2419
  %v2470 = vadd.f32 %v2350, %v2419
  %v2471 = vadd.f32 %v2351, %v2419
  %v2472 = vadd.f32 %v2352, %v2419
  %v2473 = vadd.f32 %v2353, %v2424
  %v2474 = vadd.f32 %v2354, %v2424
  %v2475 = vadd.f32 %v2355, %v2424
  %v2476 = vadd.f32 %v2356, %v2424
  %v2477 = vadd.f32 %v2357, %v2424
  %v2478 = vadd.f32 %v2358, %v2424
  %v2479 = vadd.f32 %v2359, %v2424
  %v2480 = vadd.f32 %v2360, %v2424
  %v2481 = vadd.f32 %v2361, %v2424
  %v2482 = vadd.f32 %v2362, %v2429
  %v2483 = vadd.f32 %v2363, %v2429
  %v2484 = vadd.f32 %v2364, %v2429
  %v2485 = vadd.f32 %v2365, %v2429
  %v2486 = vadd.f32 %v2366, %v2429
  %v2487 = vadd.f32 %v2367, %v2429
  %v2488 = vadd.f32 %v2368, %v2429
  %v2489 = vadd.f32 %v2369, %v2429
  %v2490 = vadd.f32 %v2370, %v2429
  %v2491 = vadd.f32 %v2371, %v2434
  %v2492 = vadd.f32 %v2372, %v2434
  %v2493 = vadd.f32 %v2373, %v2434
  %v2494 = vadd.f32 %v2374, %v2434
  %v2495 = vadd.f32 %v2375, %v2434
  %v2496 = vadd.f32 %v2376, %v2434
  %v2497 = vadd.f32 %v2377, %v2434
  %v2498 = vadd.f32 %v2378, %v2434
  %v2499 = vadd.f32 %v2379, %v2434
  %v2500 = vadd.f32 %v2380, %v2439
  %v2501 = vadd.f32 %v2381, %v2439
  %v2502 = vadd.f32 %v2382, %v2439
  %v2503 = vadd.f32 %v2383, %v2439
  %v2504 = vadd.f32 %v2384, %v2439
  %v2505 = vadd.f32 %v2385, %v2439
  %v2506 = vadd.f32 %v2386, %v2439
  %v2507 = vadd.f32 %v2387, %v2439
  %v2508 = vadd.f32 %v2388, %v2439
  %v2509 = vadd.f32 %v2389, %v2444
  %v2510 = vadd.f32 %v2390, %v2444
  %v2511 = vadd.f32 %v2391, %v2444
  %v2512 = vadd.f32 %v2392, %v2444
  %v2513 = vadd.f32 %v2393, %v2444
  %v2514 = vadd.f32 %v2394, %v2444
  %v2515 = vadd.f32 %v2395, %v2444
  %v2516 = vadd.f32 %v2396, %v2444
  %v2517 = vadd.f32 %v2397, %v2444
  %v2518 = vmax.f32 %v2446, 0.0
  %v2519 = vmax.f32 %v2447, 0.0
  %v2520 = vmax.f32 %v2448, 0.0
  %v2521 = vmax.f32 %v2449, 0.0
  %v2522 = vmax.f32 %v2450, 0.0
  %v2523 = vmax.f32 %v2451, 0.0
  %v2524 = vmax.f32 %v2452, 0.0
  %v2525 = vmax.f32 %v2453, 0.0
  %v2526 = vmax.f32 %v2454, 0.0
  %v2527 = vmax.f32 %v2455, 0.0
  %v2528 = vmax.f32 %v2456, 0.0
  %v2529 = vmax.f32 %v2457, 0.0
  %v2530 = vmax.f32 %v2458, 0.0
  %v2531 = vmax.f32 %v2459, 0.0
  %v2532 = vmax.f32 %v2460, 0.0
  %v2533 = vmax.f32 %v2461, 0.0
  %v2534 = vmax.f32 %v2462, 0.0
  %v2535 = vmax.f32 %v2463, 0.0
  %v2536 = vmax.f32 %v2464, 0.0
  %v2537 = vmax.f32 %v2465, 0.0
  %v2538 = vmax.f32 %v2466, 0.0
  %v2539 = vmax.f32 %v2467, 0.0
  %v2540 = vmax.f32 %v2468, 0.0
  %v2541 = vmax.f32 %v2469, 0.0
  %v2542 = vmax.f32 %v2470, 0.0
  %v2543 = vmax.f32 %v2471, 0.0
  %v2544 = vmax.f32 %v2472, 0.0
  %v2545 = vmax.f32 %v2473, 0.0
  %v2546 = vmax.f32 %v2474, 0.0
  %v2547 = vmax.f32 %v2475, 0.0
  %v2548 = vmax.f32 %v2476, 0.0
  %v2549 = vmax.f32 %v2477, 0.0
  %v2550 = vmax.f32 %v2478, 0.0
  %v2551 = vmax.f32 %v2479, 0.0
  %v2552 = vmax.f32 %v2480, 0.0
  %v2553 = vmax.f32 %v2481, 0.0
  %v2554 = vadd.f32 %v2518, %v2536
  %v2555 = vadd.f32 %v2519, %v2537
  %v2556 = vadd.f32 %v2520, %v2538
  %v2557 = vadd.f32 %v2521, %v2539
  %v2558 = vadd.f32 %v2522, %v2540
  %v2559 = vadd.f32 %v2523, %v2541
  %v2560 = vadd.f32 %v2524, %v2542
  %v2561 = vadd.f32 %v2525, %v2543
  %v2562 = vadd.f32 %v2526, %v2544
  %v2563 = vadd.f32 %v2527, %v2545
  %v2564 = vadd.f32 %v2528, %v2546
  %v2565 = vadd.f32 %v2529, %v2547
  %v2566 = vadd.f32 %v2530, %v2548
  %v2567 = vadd.f32 %v2531, %v2549
  %v2568 = vadd.f32 %v2532, %v2550
  %v2569 = vadd.f32 %v2533, %v2551
  %v2570 = vadd.f32 %v2534, %v2552
  %v2571 = vadd.f32 %v2535, %v2553
  %v2572 = vmax.f32 %v2482, 0.0
  %v2573 = vmax.f32 %v2483, 0.0
  %v2574 = vmax.f32 %v2484, 0.0
  %v2575 = vmax.f32 %v2485, 0.0
  %v2576 = vmax.f32 %v2486, 0.0
  %v2577 = vmax.f32 %v2487, 0.0
  %v2578 = vmax.f32 %v2488, 0.0
  %v2579 = vmax.f32 %v2489, 0.0
  %v2580 = vmax.f32 %v2490, 0.0
  %v2581 = vmax.f32 %v2491, 0.0
  %v2582 = vmax.f32 %v2492, 0.0
  %v2583 = vmax.f32 %v2493, 0.0
  %v2584 = vmax.f32 %v2494, 0.0
  %v2585 = vmax.f32 %v2495, 0.0
  %v2586 = vmax.f32 %v2496, 0.0
  %v2587 = vmax.f32 %v2497, 0.0
  %v2588 = vmax.f32 %v2498, 0.0
  %v2589 = vmax.f32 %v2499, 0.0
  %v2590 = vadd.f32 %v2554, %v2572
  %v2591 = vadd.f32 %v2555, %v2573
  %v2592 = vadd.f32 %v2556, %v2574
  %v2593 = vadd.f32 %v2557, %v2575
  %v2594 = vadd.f32 %v2558, %v2576
  %v2595 = vadd.f32 %v2559, %v2577
  %v2596 = vadd.f32 %v2560, %v2578
  %v2597 = vadd.f32 %v2561, %v2579
  %v2598 = vadd.f32 %v2562, %v2580
  %v2599 = vadd.f32 %v2563, %v2581
  %v2600 = vadd.f32 %v2564, %v2582
  %v2601 = vadd.f32 %v2565, %v2583
  %v2602 = vadd.f32 %v2566, %v2584
  %v2603 = vadd.f32 %v2567, %v2585
  %v2604 = vadd.f32 %v2568, %v2586
  %v2605 = vadd.f32 %v2569, %v2587
  %v2606 = vadd.f32 %v2570, %v2588
  %v2607 = vadd.f32 %v2571, %v2589
  %v2608 = vmax.f32 %v2500, 0.0
  %v2609 = vmax.f32 %v2501, 0.0
  %v2610 = vmax.f32 %v2502, 0.0
  %v2611 = vmax.f32 %v2503, 0.0
  %v2612 = vmax.f32 %v2504, 0.0
  %v2613 = vmax.f32 %v2505, 0.0
  %v2614 = vmax.f32 %v2506, 0.0
  %v2615 = vmax.f32 %v2507, 0.0
  %v2616 = vmax.f32 %v2508, 0.0
  %v2617 = vmax.f32 %v2509, 0.0
  %v2618 = vmax.f32 %v2510, 0.0
  %v2619 = vmax.f32 %v2511, 0.0
  %v2620 = vmax.f32 %v2512, 0.0
  %v2621 = vmax.f32 %v2513, 0.0
  %v2622 = vmax.f32 %v2514, 0.0
  %v2623 = vmax.f32 %v2515, 0.0
  %v2624 = vmax.f32 %v2516, 0.0
  %v2625 = vmax.f32 %v2517, 0.0
  %v2626 = vadd.f32 %v2590, %v2608
  %v2627 = vadd.f32 %v2591, %v2609
  %v2628 = vadd.f32 %v2592, %v2610
  %v2629 = vadd.f32 %v2593, %v2611
  %v2630 = vadd.f32 %v2594, %v2612
  %v2631 = vadd.f32 %v2595, %v2613
  %v2632 = vadd.f32 %v2596, %v2614
  %v2633 = vadd.f32 %v2597, %v2615
  %v2634 = vadd.f32 %v2598, %v2616
  %v2635 = vadd.f32 %v2599, %v2617
  %v2636 = vadd.f32 %v2600, %v2618
  %v2637 = vadd.f32 %v2601, %v2619
  %v2638 = vadd.f32 %v2602, %v2620
  %v2639 = vadd.f32 %v2603, %v2621
  %v2640 = vadd.f32 %v2604, %v2622
  %v2641 = vadd.f32 %v2605, %v2623
  %v2642 = vadd.f32 %v2606, %v2624
  %v2643 = vadd.f32 %v2607, %v2625
  %2644 = vst [vmem:[%s3] sm:$0xff] %v2626
  %2645 = vst [vmem:[%s3 + $0x8] sm:$0xff] %v2627
  %2646 = vst [vmem:[%s3 + $0x10] sm:$0xff] %v2628
  %2647 = vst [vmem:[%s3 + $0x18] sm:$0xff] %v2629
  %2648 = vst [vmem:[%s3 + $0x20] sm:$0xff] %v2630
  %2649 = vst [vmem:[%s3 + $0x28] sm:$0xff] %v2631
  %2650 = vst [vmem:[%s3 + $0x30] sm:$0xff] %v2632
  %2651 = vst [vmem:[%s3 + $0x38] sm:$0xff] %v2633
  %vm2652 = vcmask 261120
  %2653 = vst.msk [vmem:[%s3 + $0x40] sm:$0xff] %vm2652, %v2634
  %2654 = vst [vmem:[%s3 + $0x48] sm:$0xff] %v2635
  %2655 = vst [vmem:[%s3 + $0x50] sm:$0xff] %v2636
  %2656 = vst [vmem:[%s3 + $0x58] sm:$0xff] %v2637
  %2657 = vst [vmem:[%s3 + $0x60] sm:$0xff] %v2638
  %2658 = vst [vmem:[%s3 + $0x68] sm:$0xff] %v2639
  %2659 = vst [vmem:[%s3 + $0x70] sm:$0xff] %v2640
  %2660 = vst [vmem:[%s3 + $0x78] sm:$0xff] %v2641
  %2661 = vst [vmem:[%s3 + $0x80] sm:$0xff] %v2642
  %2662 = vst.msk [vmem:[%s3 + $0x88] sm:$0xff] %vm2652, %v2643
  // Predicated region
  $region14: #{conv_relu_avgpool.1} parent=0 // pred_check
    _
  $region15: #{conv_relu_avgpool.1} parent=0 // pred_check_branch
    %2664 = sbr.rel (0) target = $region17
  $region16: #{conv_relu_avgpool.1} parent=0 // pred_region
    _
  $region17: #{conv_relu_avgpool.1} parent=0 // pred_fallthru
    _
  // Predicated region
  $region18: #{conv_relu_avgpool.1} parent=0 // pred_check
    _
  $region19: #{conv_relu_avgpool.1} parent=0 // pred_check_branch
    %2666 = sbr.rel (0) target = $region21
  $region20: #{conv_relu_avgpool.1} parent=0 // pred_region
    _
  $region21: #{conv_relu_avgpool.1} parent=0 // pred_fallthru
    _

</llo_original>
